<compile_context>
chip_gen: v7x
topology: tpu7x:2x2x1
jax: 0.10.0
libtpu: 0.0.40
codegen_flags: <defaults>
</compile_context>

<pallas_src>
import jax
import jax.numpy as jnp
import numpy as np
from jax.experimental import pallas as pl
from jax.experimental.pallas import tpu as pltpu

NUM_CLASSES = 4
NC_PER = 2                      # classes handled per parallel grid slice
NPAR = NUM_CLASSES // NC_PER    # 2 slices -> maps to the 2 TCs on v7x

# Sobel operators (identical values to the PyTorch module); used by the ref.
_SOBEL_X = ((-1.0, 0.0, 1.0), (-2.0, 0.0, 2.0), (-1.0, 0.0, 1.0))
_SOBEL_Y = ((-1.0, -2.0, -1.0), (0.0, 0.0, 0.0), (1.0, 2.0, 1.0))


def _gradient_loss_kernel(gt_ref, edge_ref, selt_ref, out_ref, e_acc, g_acc):
  """Grid = (class-pair p [parallel], batch-block b [arbitrary]).

  gt_ref   : (NB, H, W)            int labels
  edge_ref : (NB, 2*NC_PER, H, W)  logits for this slice's 2 classes
  selt_ref : (H, H) bf16           S^T with S[i, 1+src(i)] = 1 (torch 'nearest'
                                   rows shifted into the full-grid accumulator)
  out_ref  : (1, 3, NC_PER) f32 SMEM  rows = [sum(E*upG), sum(E), sum(upG)]
  e_acc    : VMEM (NC_PER, H, W)   batch-accumulated edge decisions
  g_acc    : VMEM (NC_PER, H, W)   batch-accumulated full-grid Sobel maps
  """
  p = pl.program_id(0)
  b = pl.program_id(1)
  nsteps = pl.num_programs(1)
  NB, H, W = gt_ref.shape

  @pl.when(b == 0)
  def _init():
    e_acc[...] = jnp.zeros_like(e_acc)
    g_acc[...] = jnp.zeros_like(g_acc)

  # Static 1-pixel-border mask: the rolled Sobel taps wrap around there, and
  # the 'valid' conv has no border outputs anyway.
  row = jax.lax.broadcasted_iota(jnp.int32, (H, W), 0)
  col = jax.lax.broadcasted_iota(jnp.int32, (H, W), 1)
  interior = (row >= 1) & (row <= H - 2) & (col >= 1) & (col <= W - 2)

  # NB is small by construction; each (nb, class) flushes straight into the
  # VMEM accumulators so live ranges stay bounded to one (H, W) working set.
  for nb in range(NB):
    gt = gt_ref[nb]                                   # (H, W) labels
    for cc in range(NC_PER):
      c_glob = NC_PER * p + cc                        # global class id
      oh = (gt == c_glob).astype(jnp.float32)         # one_hot(img_gt,4)[...,c]

      # Fused Sobel X/Y on the full (H, W) grid via XLU rotations (lane-aligned
      # full-width results -> unmasked accumulator stores). |gx|+|gy| in the
      # interior is invariant to the rotation sign convention (the Sobel
      # magnitude stencil is point-symmetric), and the wrap garbage only lands
      # on the masked border.
      up    = pltpu.roll(oh, shift=1,     axis=0)     # oh[i-1, j]
      down  = pltpu.roll(oh, shift=H - 1, axis=0)     # oh[i+1, j]
      left  = pltpu.roll(oh, shift=1,     axis=1)     # oh[i, j-1]
      right = pltpu.roll(oh, shift=W - 1, axis=1)     # oh[i, j+1]
      ul = pltpu.roll(up,   shift=1,     axis=1)      # oh[i-1, j-1]
      ur = pltpu.roll(up,   shift=W - 1, axis=1)      # oh[i-1, j+1]
      dl = pltpu.roll(down, shift=1,     axis=1)      # oh[i+1, j-1]
      dr = pltpu.roll(down, shift=W - 1, axis=1)      # oh[i+1, j+1]
      gx = (ur - ul) + 2.0 * (right - left) + (dr - dl)
      gy = (dl - ul) + 2.0 * (down - up) + (dr - ur)
      g = (interior & ((jnp.abs(gx) + jnp.abs(gy)) > 0.0)).astype(g_acc.dtype)

      # round(softmax(edge[:, 2c:2c+2], dim=1)[:, 1]) == 1[logit1 > logit0]
      # (ties -> p == 0.5 -> round-half-to-even -> 0; strict '>' also gives 0).
      e = (edge_ref[nb, 2 * cc + 1, :, :] >
           edge_ref[nb, 2 * cc, :, :]).astype(e_acc.dtype)

      e_acc[cc, :, :] = e_acc[cc, :, :] + e
      g_acc[cc, :, :] = g_acc[cc, :, :] + g

  @pl.when(b == nsteps - 1)
  def _finalize():
    selt_f32 = selt_ref[...].astype(jnp.float32)          # (H, H) = S^T
    selt = selt_f32.astype(e_acc.dtype)                    # exact 0/1 cast
    # Replication counts (row-sums of S^T): sum(upsample(G)) = sum(q * cnt).
    cnt = jnp.sum(selt_f32, axis=1, keepdims=True)         # (H, 1)
    # TODO(synk): the q-side matmuls could be merged into one (NC_PER*H, W)
    #             matmul; finalize runs once per call so it is left per-class.
    for cc in range(NC_PER):
      e_c = e_acc[cc, :, :]
      g_c = g_acc[cc, :, :]
      # sum(E * upsample(G)) == sum((S^T @ E) * (G @ S^T)); operands are exact
      # small integers and the MXU accumulates in f32.
      pm = jnp.dot(selt, e_c, preferred_element_type=jnp.float32)   # (H, W)
      qm = jnp.dot(g_c, selt, preferred_element_type=jnp.float32)   # (H, W)
      out_ref[0, 0, cc] = jnp.sum(pm * qm)
      out_ref[0, 1, cc] = jnp.sum(e_c.astype(jnp.float32))          # exact f32
      out_ref[0, 2, cc] = jnp.sum(qm * cnt)


def _nearest_selection_T(h, valid):
  """S^T where S[i, 1 + (i*valid)//h] = 1 (torch 'nearest' row mapping,
  shifted by the 1-pixel conv border into the full-grid accumulator)."""
  dst = np.arange(h)
  src = (dst * valid) // h + 1
  s = np.zeros((h, h), np.float32)
  s[dst, src] = 1.0
  return s.T


def _vmem_capacity_bytes():
  try:
    info = pltpu.get_tpu_info()
    cap = int(getattr(info, "vmem_capacity_bytes", 0) or 0)
    if cap > 0:
      return cap
  except Exception:
    pass
  return 64 * 1024 * 1024   # conservative fallback (v7x per-core VMEM)


def _pick_block_batch(n, h, w, edge_itemsize, gt_itemsize, acc_itemsize,
                      vmem_cap):
  """Largest divisor of N (<= 8) whose footprint fits the VMEM budget."""
  budget = int(0.6 * vmem_cap)
  fixed = 2 * NC_PER * h * w * acc_itemsize        # e_acc + g_acc scratch
  fixed += 2 * h * h * 2                           # selt (bf16) double-buffer
  # double-buffered per-batch-element inputs (only 4 edge channels per slice)
  per_elem = 2 * (2 * NC_PER * h * w * edge_itemsize + h * w * gt_itemsize)
  cap_nb = int(max(1, min(8, (budget - fixed) // max(per_elem, 1))))
  nb = 1
  for d in range(1, n + 1):
    if n % d == 0 and d <= cap_nb:
      nb = d
  est = fixed + nb * per_elem + (2 << 20)
  return nb, est


@jax.jit
def gradient_loss(edge, img_gt):
  """Pallas version of GradientLoss.forward (Sobel, dice path)."""
  N, C2, H, W = edge.shape
  assert C2 == 2 * NUM_CLASSES
  assert H == W, "F.interpolate(size=img.shape[-1]) makes output square; assume H == W"
  assert img_gt.shape == (N, H, W)

  vmem_cap = _vmem_capacity_bytes()
  # bf16 accumulators hold integer batch counts exactly only up to 255.
  acc_dtype = jnp.bfloat16 if N <= 255 else jnp.float32
  acc_itemsize = jnp.dtype(acc_dtype).itemsize
  NB, est_vmem = _pick_block_batch(N, H, W, edge.dtype.itemsize,
                                   img_gt.dtype.itemsize, acc_itemsize,
                                   vmem_cap)
  vmem_limit = int(min(vmem_cap, max(2 * est_vmem, 32 << 20)))

  # Static nearest-neighbor selection matrix, hoisted out of the kernel.
  selt = jnp.asarray(_nearest_selection_T(H, H - 2), dtype=jnp.bfloat16)

  sums = pl.pallas_call(
      _gradient_loss_kernel,
      out_shape=jax.ShapeDtypeStruct((NPAR, 3, NC_PER), jnp.float32),
      grid_spec=pltpu.PrefetchScalarGridSpec(
          num_scalar_prefetch=0,
          grid=(NPAR, N // NB),
          in_specs=[
              pl.BlockSpec((NB, H, W), lambda p, b: (b, 0, 0)),
              pl.BlockSpec((NB, 2 * NC_PER, H, W), lambda p, b: (b, p, 0, 0)),
              pl.BlockSpec((H, H), lambda p, b: (0, 0)),
          ],
          out_specs=pl.BlockSpec((1, 3, NC_PER), lambda p, b: (p, 0, 0),
                                 memory_space=pltpu.SMEM),
          scratch_shapes=[
              pltpu.VMEM((NC_PER, H, W), acc_dtype),
              pltpu.VMEM((NC_PER, H, W), acc_dtype),
          ],
      ),
      compiler_params=pltpu.CompilerParams(
          dimension_semantics=("parallel", "arbitrary"),
          vmem_limit_bytes=vmem_limit),
  )(img_gt, edge, selt)

  # sums[p, :, cc] holds [num, sum(E), sum(upG)] for global class 2p + cc.
  per_class = jnp.transpose(sums, (1, 0, 2)).reshape(3, NUM_CLASSES)
  num, se, sg = per_class[0], per_class[1], per_class[2]
  # Faithful to the reference's (N,1,H,W) op (N,H,W) -> (N,N,H,W) broadcast.
  loss_per_class = 1.0 - (2.0 * num) / (N * (se + sg) + 1e-10)
  return jnp.sum(loss_per_class) / NUM_CLASSES


def gradient_loss_ref(edge, img_gt):
  """Pure-JAX mirror of the PyTorch forward (for verification)."""
  N, C2, H, W = edge.shape
  oh = jax.nn.one_hot(img_gt, NUM_CLASSES, axis=1, dtype=jnp.float32)  # (N,4,H,W)
  Ho, Wo = H - 2, W - 2
  gx = jnp.zeros((N, NUM_CLASSES, Ho, Wo), jnp.float32)
  gy = jnp.zeros_like(gx)
  for u in range(3):
    for v in range(3):
      sl = oh[:, :, u:u + Ho, v:v + Wo]
      gx = gx + _SOBEL_X[u][v] * sl
      gy = gy + _SOBEL_Y[u][v] * sl
  grad = ((jnp.abs(gx) + jnp.abs(gy)) > 0).astype(jnp.float32)
  idx = (jnp.arange(W) * Ho) // W                       # torch nearest indices
  grad_up = grad[:, :, idx, :][:, :, :, idx]            # (N,4,W,W)
  loss_sum = 0.0
  for c in range(NUM_CLASSES):
    p = jax.nn.softmax(edge[:, 2 * c:2 * c + 2], axis=1)[:, 1]   # (N,H,W)
    edge_i = jnp.round(p)[:, None]                                # (N,1,H,W)
    g = grad_up[:, c]                                             # (N,H,W)
    loss_sum += 1.0 - (2.0 * edge_i * g).sum() / ((edge_i + g).sum() + 1e-10)
  return loss_sum / NUM_CLASSES


if __name__ == "__main__":
  key = jax.random.PRNGKey(0)
  k1, k2 = jax.random.split(key)
  N, H, W = 2, 16, 16
  edge = jax.random.normal(k1, (N, 2 * NUM_CLASSES, H, W), dtype=jnp.float32)
  img_gt = jax.random.randint(k2, (N, H, W), 0, NUM_CLASSES, dtype=jnp.int32)

  loss = gradient_loss(edge, img_gt)
  jax.block_until_ready(loss)

  ref = gradient_loss_ref(edge, img_gt)
  np.testing.assert_allclose(np.asarray(loss), np.asarray(ref),
                             rtol=1e-5, atol=1e-5)
  print("KERNEL_OK")
</pallas_src>

<mosaic_0001>
module attributes {stable_mosaic.version = 11 : i64} {
  func.func @_gradient_loss_kernel(%arg0: i32, %arg1: i32, %arg2: memref<2x16x16xi32, #tpu.memory_space<vmem>>, %arg3: memref<2x4x16x16xf32, #tpu.memory_space<vmem>>, %arg4: memref<16x16xbf16, #tpu.memory_space<vmem>>, %arg5: memref<1x3x2xf32, #tpu.memory_space<smem>>, %arg6: memref<2x16x16xbf16, #tpu.memory_space<vmem>>, %arg7: memref<2x16x16xbf16, #tpu.memory_space<vmem>>) attributes {dimension_semantics = [#tpu.dimension_semantics<parallel>, #tpu.dimension_semantics<arbitrary>], iteration_bounds = array<i64: 2, 1>, scalar_prefetch = 0 : i64, scratch_operands = 2 : i64, tpu.core_type = #tpu.core_type<tc>, window_params = [{transform_indices = @transform_0, window_bounds = array<i64: 2, 16, 16>}, {transform_indices = @transform_1, window_bounds = array<i64: 2, 4, 16, 16>}, {pipeline_mode = #tpu.pipeline_mode<synchronous>, transform_indices = @transform_2, window_bounds = array<i64: 16, 16>}, {transform_indices = @transform_3, window_bounds = array<i64: 1, 3, 2>}]} {
    %c0_i32 = arith.constant 0 : i32
    %0 = arith.cmpi eq, %arg1, %c0_i32 : i32
    %1 = arith.extui %0 : i1 to i32
    %c0_i32_0 = arith.constant 0 : i32
    %2 = arith.cmpi ne, %1, %c0_i32_0 : i32
    scf.if %2 {
      %cst_136 = arith.constant 0.000000e+00 : bf16
      %251 = vector.broadcast %cst_136 : bf16 to vector<2x16x16xbf16>
      %c0_137 = arith.constant 0 : index
      %c0_138 = arith.constant 0 : index
      %c0_139 = arith.constant 0 : index
      %252 = vector.load %arg6[%c0_137, %c0_138, %c0_139] : memref<2x16x16xbf16, #tpu.memory_space<vmem>>, vector<2x16x16xbf16>
      tpu.vector_store %arg6[%c0_137, %c0_138, %c0_139], %251 {strides = array<i32>} : memref<2x16x16xbf16, #tpu.memory_space<vmem>>, vector<2x16x16xbf16>,
      %cst_140 = arith.constant 0.000000e+00 : bf16
      %253 = vector.broadcast %cst_140 : bf16 to vector<2x16x16xbf16>
      %c0_141 = arith.constant 0 : index
      %c0_142 = arith.constant 0 : index
      %c0_143 = arith.constant 0 : index
      %254 = vector.load %arg7[%c0_141, %c0_142, %c0_143] : memref<2x16x16xbf16, #tpu.memory_space<vmem>>, vector<2x16x16xbf16>
      tpu.vector_store %arg7[%c0_141, %c0_142, %c0_143], %253 {strides = array<i32>} : memref<2x16x16xbf16, #tpu.memory_space<vmem>>, vector<2x16x16xbf16>,
    } else {
    }
    %3 = tpu.iota {dimensions = array<i32: 0>} : vector<16x16xi32>
    %4 = tpu.iota {dimensions = array<i32: 1>} : vector<16x16xi32>
    %c1_i32 = arith.constant 1 : i32
    %5 = vector.broadcast %c1_i32 : i32 to vector<16x16xi32>
    %6 = arith.cmpi sge, %3, %5 : vector<16x16xi32>
    %c14_i32 = arith.constant 14 : i32
    %7 = vector.broadcast %c14_i32 : i32 to vector<16x16xi32>
    %8 = arith.cmpi sle, %3, %7 : vector<16x16xi32>
    %9 = arith.andi %6, %8 : vector<16x16xi1>
    %c1_i32_1 = arith.constant 1 : i32
    %10 = vector.broadcast %c1_i32_1 : i32 to vector<16x16xi32>
    %11 = arith.cmpi sge, %4, %10 : vector<16x16xi32>
    %12 = arith.andi %9, %11 : vector<16x16xi1>
    %c14_i32_2 = arith.constant 14 : i32
    %13 = vector.broadcast %c14_i32_2 : i32 to vector<16x16xi32>
    %14 = arith.cmpi sle, %4, %13 : vector<16x16xi32>
    %15 = arith.andi %12, %14 : vector<16x16xi1>
    %c0 = arith.constant 0 : index
    %c0_3 = arith.constant 0 : index
    %c0_4 = arith.constant 0 : index
    %16 = vector.load %arg2[%c0, %c0_3, %c0_4] : memref<2x16x16xi32, #tpu.memory_space<vmem>>, vector<1x16x16xi32>
    %17 = vector.shape_cast %16 : vector<1x16x16xi32> to vector<16x16xi32>
    %c2_i32 = arith.constant 2 : i32
    %18 = arith.muli %c2_i32, %arg0 : i32
    %c0_i32_5 = arith.constant 0 : i32
    %19 = arith.addi %18, %c0_i32_5 : i32
    %20 = vector.broadcast %19 : i32 to vector<16x16xi32>
    %21 = arith.cmpi eq, %17, %20 : vector<16x16xi32>
    %22 = arith.extui %21 : vector<16x16xi1> to vector<16x16xi32>
    %23 = arith.sitofp %22 : vector<16x16xi32> to vector<16x16xf32>
    %c1_i32_6 = arith.constant 1 : i32
    %24 = tpu.dynamic_rotate %23 by %c1_i32_6 dim 0 : vector<16x16xf32>, i32 -> vector<16x16xf32>
    %c15_i32 = arith.constant 15 : i32
    %25 = tpu.dynamic_rotate %23 by %c15_i32 dim 0 : vector<16x16xf32>, i32 -> vector<16x16xf32>
    %c1_i32_7 = arith.constant 1 : i32
    %26 = tpu.dynamic_rotate %23 by %c1_i32_7 dim 1 : vector<16x16xf32>, i32 -> vector<16x16xf32>
    %c15_i32_8 = arith.constant 15 : i32
    %27 = tpu.dynamic_rotate %23 by %c15_i32_8 dim 1 : vector<16x16xf32>, i32 -> vector<16x16xf32>
    %c1_i32_9 = arith.constant 1 : i32
    %28 = tpu.dynamic_rotate %24 by %c1_i32_9 dim 1 : vector<16x16xf32>, i32 -> vector<16x16xf32>
    %c15_i32_10 = arith.constant 15 : i32
    %29 = tpu.dynamic_rotate %24 by %c15_i32_10 dim 1 : vector<16x16xf32>, i32 -> vector<16x16xf32>
    %c1_i32_11 = arith.constant 1 : i32
    %30 = tpu.dynamic_rotate %25 by %c1_i32_11 dim 1 : vector<16x16xf32>, i32 -> vector<16x16xf32>
    %c15_i32_12 = arith.constant 15 : i32
    %31 = tpu.dynamic_rotate %25 by %c15_i32_12 dim 1 : vector<16x16xf32>, i32 -> vector<16x16xf32>
    %32 = arith.subf %29, %28 : vector<16x16xf32>
    %33 = arith.subf %27, %26 : vector<16x16xf32>
    %cst = arith.constant 2.000000e+00 : f32
    %34 = vector.broadcast %cst : f32 to vector<16x16xf32>
    %35 = arith.mulf %34, %33 : vector<16x16xf32>
    %36 = arith.addf %32, %35 : vector<16x16xf32>
    %37 = arith.subf %31, %30 : vector<16x16xf32>
    %38 = arith.addf %36, %37 : vector<16x16xf32>
    %39 = arith.subf %30, %28 : vector<16x16xf32>
    %40 = arith.subf %25, %24 : vector<16x16xf32>
    %cst_13 = arith.constant 2.000000e+00 : f32
    %41 = vector.broadcast %cst_13 : f32 to vector<16x16xf32>
    %42 = arith.mulf %41, %40 : vector<16x16xf32>
    %43 = arith.addf %39, %42 : vector<16x16xf32>
    %44 = arith.subf %31, %29 : vector<16x16xf32>
    %45 = arith.addf %43, %44 : vector<16x16xf32>
    %46 = math.absf %38 : vector<16x16xf32>
    %47 = math.absf %45 : vector<16x16xf32>
    %48 = arith.addf %46, %47 : vector<16x16xf32>
    %cst_14 = arith.constant 0.000000e+00 : f32
    %49 = vector.broadcast %cst_14 : f32 to vector<16x16xf32>
    %50 = arith.cmpf ogt, %48, %49 : vector<16x16xf32>
    %51 = arith.andi %15, %50 : vector<16x16xi1>
    %52 = arith.extui %51 : vector<16x16xi1> to vector<16x16xi32>
    %53 = arith.sitofp %52 : vector<16x16xi32> to vector<16x16xf32>
    %54 = arith.truncf %53 : vector<16x16xf32> to vector<16x16xbf16>
    %c0_15 = arith.constant 0 : index
    %c1 = arith.constant 1 : index
    %c0_16 = arith.constant 0 : index
    %c0_17 = arith.constant 0 : index
    %55 = vector.load %arg3[%c0_15, %c1, %c0_16, %c0_17] : memref<2x4x16x16xf32, #tpu.memory_space<vmem>>, vector<1x1x16x16xf32>
    %56 = vector.shape_cast %55 : vector<1x1x16x16xf32> to vector<16x16xf32>
    %c0_18 = arith.constant 0 : index
    %c0_19 = arith.constant 0 : index
    %c0_20 = arith.constant 0 : index
    %c0_21 = arith.constant 0 : index
    %57 = vector.load %arg3[%c0_18, %c0_19, %c0_20, %c0_21] : memref<2x4x16x16xf32, #tpu.memory_space<vmem>>, vector<1x1x16x16xf32>
    %58 = vector.shape_cast %57 : vector<1x1x16x16xf32> to vector<16x16xf32>
    %59 = arith.cmpf ogt, %56, %58 : vector<16x16xf32>
    %60 = arith.extui %59 : vector<16x16xi1> to vector<16x16xi32>
    %61 = arith.sitofp %60 : vector<16x16xi32> to vector<16x16xf32>
    %62 = arith.truncf %61 : vector<16x16xf32> to vector<16x16xbf16>
    %c0_22 = arith.constant 0 : index
    %c0_23 = arith.constant 0 : index
    %c0_24 = arith.constant 0 : index
    %63 = vector.load %arg6[%c0_22, %c0_23, %c0_24] : memref<2x16x16xbf16, #tpu.memory_space<vmem>>, vector<1x16x16xbf16>
    %64 = vector.shape_cast %63 : vector<1x16x16xbf16> to vector<16x16xbf16>
    %65 = arith.addf %64, %62 : vector<16x16xbf16>
    %c0_25 = arith.constant 0 : index
    %c0_26 = arith.constant 0 : index
    %c0_27 = arith.constant 0 : index
    %66 = vector.load %arg6[%c0_25, %c0_26, %c0_27] : memref<2x16x16xbf16, #tpu.memory_space<vmem>>, vector<1x16x16xbf16>
    %67 = vector.shape_cast %66 : vector<1x16x16xbf16> to vector<16x16xbf16>
    %68 = vector.shape_cast %65 : vector<16x16xbf16> to vector<1x16x16xbf16>
    tpu.vector_store %arg6[%c0_25, %c0_26, %c0_27], %68 {strides = array<i32>} : memref<2x16x16xbf16, #tpu.memory_space<vmem>>, vector<1x16x16xbf16>,
    %c0_28 = arith.constant 0 : index
    %c0_29 = arith.constant 0 : index
    %c0_30 = arith.constant 0 : index
    %69 = vector.load %arg7[%c0_28, %c0_29, %c0_30] : memref<2x16x16xbf16, #tpu.memory_space<vmem>>, vector<1x16x16xbf16>
    %70 = vector.shape_cast %69 : vector<1x16x16xbf16> to vector<16x16xbf16>
    %71 = arith.addf %70, %54 : vector<16x16xbf16>
    %c0_31 = arith.constant 0 : index
    %c0_32 = arith.constant 0 : index
    %c0_33 = arith.constant 0 : index
    %72 = vector.load %arg7[%c0_31, %c0_32, %c0_33] : memref<2x16x16xbf16, #tpu.memory_space<vmem>>, vector<1x16x16xbf16>
    %73 = vector.shape_cast %72 : vector<1x16x16xbf16> to vector<16x16xbf16>
    %74 = vector.shape_cast %71 : vector<16x16xbf16> to vector<1x16x16xbf16>
    tpu.vector_store %arg7[%c0_31, %c0_32, %c0_33], %74 {strides = array<i32>} : memref<2x16x16xbf16, #tpu.memory_space<vmem>>, vector<1x16x16xbf16>,
    %c2_i32_34 = arith.constant 2 : i32
    %75 = arith.muli %c2_i32_34, %arg0 : i32
    %c1_i32_35 = arith.constant 1 : i32
    %76 = arith.addi %75, %c1_i32_35 : i32
    %77 = vector.broadcast %76 : i32 to vector<16x16xi32>
    %78 = arith.cmpi eq, %17, %77 : vector<16x16xi32>
    %79 = arith.extui %78 : vector<16x16xi1> to vector<16x16xi32>
    %80 = arith.sitofp %79 : vector<16x16xi32> to vector<16x16xf32>
    %c1_i32_36 = arith.constant 1 : i32
    %81 = tpu.dynamic_rotate %80 by %c1_i32_36 dim 0 : vector<16x16xf32>, i32 -> vector<16x16xf32>
    %c15_i32_37 = arith.constant 15 : i32
    %82 = tpu.dynamic_rotate %80 by %c15_i32_37 dim 0 : vector<16x16xf32>, i32 -> vector<16x16xf32>
    %c1_i32_38 = arith.constant 1 : i32
    %83 = tpu.dynamic_rotate %80 by %c1_i32_38 dim 1 : vector<16x16xf32>, i32 -> vector<16x16xf32>
    %c15_i32_39 = arith.constant 15 : i32
    %84 = tpu.dynamic_rotate %80 by %c15_i32_39 dim 1 : vector<16x16xf32>, i32 -> vector<16x16xf32>
    %c1_i32_40 = arith.constant 1 : i32
    %85 = tpu.dynamic_rotate %81 by %c1_i32_40 dim 1 : vector<16x16xf32>, i32 -> vector<16x16xf32>
    %c15_i32_41 = arith.constant 15 : i32
    %86 = tpu.dynamic_rotate %81 by %c15_i32_41 dim 1 : vector<16x16xf32>, i32 -> vector<16x16xf32>
    %c1_i32_42 = arith.constant 1 : i32
    %87 = tpu.dynamic_rotate %82 by %c1_i32_42 dim 1 : vector<16x16xf32>, i32 -> vector<16x16xf32>
    %c15_i32_43 = arith.constant 15 : i32
    %88 = tpu.dynamic_rotate %82 by %c15_i32_43 dim 1 : vector<16x16xf32>, i32 -> vector<16x16xf32>
    %89 = arith.subf %86, %85 : vector<16x16xf32>
    %90 = arith.subf %84, %83 : vector<16x16xf32>
    %cst_44 = arith.constant 2.000000e+00 : f32
    %91 = vector.broadcast %cst_44 : f32 to vector<16x16xf32>
    %92 = arith.mulf %91, %90 : vector<16x16xf32>
    %93 = arith.addf %89, %92 : vector<16x16xf32>
    %94 = arith.subf %88, %87 : vector<16x16xf32>
    %95 = arith.addf %93, %94 : vector<16x16xf32>
    %96 = arith.subf %87, %85 : vector<16x16xf32>
    %97 = arith.subf %82, %81 : vector<16x16xf32>
    %cst_45 = arith.constant 2.000000e+00 : f32
    %98 = vector.broadcast %cst_45 : f32 to vector<16x16xf32>
    %99 = arith.mulf %98, %97 : vector<16x16xf32>
    %100 = arith.addf %96, %99 : vector<16x16xf32>
    %101 = arith.subf %88, %86 : vector<16x16xf32>
    %102 = arith.addf %100, %101 : vector<16x16xf32>
    %103 = math.absf %95 : vector<16x16xf32>
    %104 = math.absf %102 : vector<16x16xf32>
    %105 = arith.addf %103, %104 : vector<16x16xf32>
    %cst_46 = arith.constant 0.000000e+00 : f32
    %106 = vector.broadcast %cst_46 : f32 to vector<16x16xf32>
    %107 = arith.cmpf ogt, %105, %106 : vector<16x16xf32>
    %108 = arith.andi %15, %107 : vector<16x16xi1>
    %109 = arith.extui %108 : vector<16x16xi1> to vector<16x16xi32>
    %110 = arith.sitofp %109 : vector<16x16xi32> to vector<16x16xf32>
    %111 = arith.truncf %110 : vector<16x16xf32> to vector<16x16xbf16>
    %c0_47 = arith.constant 0 : index
    %c3 = arith.constant 3 : index
    %c0_48 = arith.constant 0 : index
    %c0_49 = arith.constant 0 : index
    %112 = vector.load %arg3[%c0_47, %c3, %c0_48, %c0_49] : memref<2x4x16x16xf32, #tpu.memory_space<vmem>>, vector<1x1x16x16xf32>
    %113 = vector.shape_cast %112 : vector<1x1x16x16xf32> to vector<16x16xf32>
    %c0_50 = arith.constant 0 : index
    %c2 = arith.constant 2 : index
    %c0_51 = arith.constant 0 : index
    %c0_52 = arith.constant 0 : index
    %114 = vector.load %arg3[%c0_50, %c2, %c0_51, %c0_52] : memref<2x4x16x16xf32, #tpu.memory_space<vmem>>, vector<1x1x16x16xf32>
    %115 = vector.shape_cast %114 : vector<1x1x16x16xf32> to vector<16x16xf32>
    %116 = arith.cmpf ogt, %113, %115 : vector<16x16xf32>
    %117 = arith.extui %116 : vector<16x16xi1> to vector<16x16xi32>
    %118 = arith.sitofp %117 : vector<16x16xi32> to vector<16x16xf32>
    %119 = arith.truncf %118 : vector<16x16xf32> to vector<16x16xbf16>
    %c1_53 = arith.constant 1 : index
    %c0_54 = arith.constant 0 : index
    %c0_55 = arith.constant 0 : index
    %120 = vector.load %arg6[%c1_53, %c0_54, %c0_55] : memref<2x16x16xbf16, #tpu.memory_space<vmem>>, vector<1x16x16xbf16>
    %121 = vector.shape_cast %120 : vector<1x16x16xbf16> to vector<16x16xbf16>
    %122 = arith.addf %121, %119 : vector<16x16xbf16>
    %c1_56 = arith.constant 1 : index
    %c0_57 = arith.constant 0 : index
    %c0_58 = arith.constant 0 : index
    %123 = vector.load %arg6[%c1_56, %c0_57, %c0_58] : memref<2x16x16xbf16, #tpu.memory_space<vmem>>, vector<1x16x16xbf16>
    %124 = vector.shape_cast %123 : vector<1x16x16xbf16> to vector<16x16xbf16>
    %125 = vector.shape_cast %122 : vector<16x16xbf16> to vector<1x16x16xbf16>
    tpu.vector_store %arg6[%c1_56, %c0_57, %c0_58], %125 {strides = array<i32>} : memref<2x16x16xbf16, #tpu.memory_space<vmem>>, vector<1x16x16xbf16>,
    %c1_59 = arith.constant 1 : index
    %c0_60 = arith.constant 0 : index
    %c0_61 = arith.constant 0 : index
    %126 = vector.load %arg7[%c1_59, %c0_60, %c0_61] : memref<2x16x16xbf16, #tpu.memory_space<vmem>>, vector<1x16x16xbf16>
    %127 = vector.shape_cast %126 : vector<1x16x16xbf16> to vector<16x16xbf16>
    %128 = arith.addf %127, %111 : vector<16x16xbf16>
    %c1_62 = arith.constant 1 : index
    %c0_63 = arith.constant 0 : index
    %c0_64 = arith.constant 0 : index
    %129 = vector.load %arg7[%c1_62, %c0_63, %c0_64] : memref<2x16x16xbf16, #tpu.memory_space<vmem>>, vector<1x16x16xbf16>
    %130 = vector.shape_cast %129 : vector<1x16x16xbf16> to vector<16x16xbf16>
    %131 = vector.shape_cast %128 : vector<16x16xbf16> to vector<1x16x16xbf16>
    tpu.vector_store %arg7[%c1_62, %c0_63, %c0_64], %131 {strides = array<i32>} : memref<2x16x16xbf16, #tpu.memory_space<vmem>>, vector<1x16x16xbf16>,
    %c1_65 = arith.constant 1 : index
    %c0_66 = arith.constant 0 : index
    %c0_67 = arith.constant 0 : index
    %132 = vector.load %arg2[%c1_65, %c0_66, %c0_67] : memref<2x16x16xi32, #tpu.memory_space<vmem>>, vector<1x16x16xi32>
    %133 = vector.shape_cast %132 : vector<1x16x16xi32> to vector<16x16xi32>
    %c2_i32_68 = arith.constant 2 : i32
    %134 = arith.muli %c2_i32_68, %arg0 : i32
    %c0_i32_69 = arith.constant 0 : i32
    %135 = arith.addi %134, %c0_i32_69 : i32
    %136 = vector.broadcast %135 : i32 to vector<16x16xi32>
    %137 = arith.cmpi eq, %133, %136 : vector<16x16xi32>
    %138 = arith.extui %137 : vector<16x16xi1> to vector<16x16xi32>
    %139 = arith.sitofp %138 : vector<16x16xi32> to vector<16x16xf32>
    %c1_i32_70 = arith.constant 1 : i32
    %140 = tpu.dynamic_rotate %139 by %c1_i32_70 dim 0 : vector<16x16xf32>, i32 -> vector<16x16xf32>
    %c15_i32_71 = arith.constant 15 : i32
    %141 = tpu.dynamic_rotate %139 by %c15_i32_71 dim 0 : vector<16x16xf32>, i32 -> vector<16x16xf32>
    %c1_i32_72 = arith.constant 1 : i32
    %142 = tpu.dynamic_rotate %139 by %c1_i32_72 dim 1 : vector<16x16xf32>, i32 -> vector<16x16xf32>
    %c15_i32_73 = arith.constant 15 : i32
    %143 = tpu.dynamic_rotate %139 by %c15_i32_73 dim 1 : vector<16x16xf32>, i32 -> vector<16x16xf32>
    %c1_i32_74 = arith.constant 1 : i32
    %144 = tpu.dynamic_rotate %140 by %c1_i32_74 dim 1 : vector<16x16xf32>, i32 -> vector<16x16xf32>
    %c15_i32_75 = arith.constant 15 : i32
    %145 = tpu.dynamic_rotate %140 by %c15_i32_75 dim 1 : vector<16x16xf32>, i32 -> vector<16x16xf32>
    %c1_i32_76 = arith.constant 1 : i32
    %146 = tpu.dynamic_rotate %141 by %c1_i32_76 dim 1 : vector<16x16xf32>, i32 -> vector<16x16xf32>
    %c15_i32_77 = arith.constant 15 : i32
    %147 = tpu.dynamic_rotate %141 by %c15_i32_77 dim 1 : vector<16x16xf32>, i32 -> vector<16x16xf32>
    %148 = arith.subf %145, %144 : vector<16x16xf32>
    %149 = arith.subf %143, %142 : vector<16x16xf32>
    %cst_78 = arith.constant 2.000000e+00 : f32
    %150 = vector.broadcast %cst_78 : f32 to vector<16x16xf32>
    %151 = arith.mulf %150, %149 : vector<16x16xf32>
    %152 = arith.addf %148, %151 : vector<16x16xf32>
    %153 = arith.subf %147, %146 : vector<16x16xf32>
    %154 = arith.addf %152, %153 : vector<16x16xf32>
    %155 = arith.subf %146, %144 : vector<16x16xf32>
    %156 = arith.subf %141, %140 : vector<16x16xf32>
    %cst_79 = arith.constant 2.000000e+00 : f32
    %157 = vector.broadcast %cst_79 : f32 to vector<16x16xf32>
    %158 = arith.mulf %157, %156 : vector<16x16xf32>
    %159 = arith.addf %155, %158 : vector<16x16xf32>
    %160 = arith.subf %147, %145 : vector<16x16xf32>
    %161 = arith.addf %159, %160 : vector<16x16xf32>
    %162 = math.absf %154 : vector<16x16xf32>
    %163 = math.absf %161 : vector<16x16xf32>
    %164 = arith.addf %162, %163 : vector<16x16xf32>
    %cst_80 = arith.constant 0.000000e+00 : f32
    %165 = vector.broadcast %cst_80 : f32 to vector<16x16xf32>
    %166 = arith.cmpf ogt, %164, %165 : vector<16x16xf32>
    %167 = arith.andi %15, %166 : vector<16x16xi1>
    %168 = arith.extui %167 : vector<16x16xi1> to vector<16x16xi32>
    %169 = arith.sitofp %168 : vector<16x16xi32> to vector<16x16xf32>
    %170 = arith.truncf %169 : vector<16x16xf32> to vector<16x16xbf16>
    %c1_81 = arith.constant 1 : index
    %c1_82 = arith.constant 1 : index
    %c0_83 = arith.constant 0 : index
    %c0_84 = arith.constant 0 : index
    %171 = vector.load %arg3[%c1_81, %c1_82, %c0_83, %c0_84] : memref<2x4x16x16xf32, #tpu.memory_space<vmem>>, vector<1x1x16x16xf32>
    %172 = vector.shape_cast %171 : vector<1x1x16x16xf32> to vector<16x16xf32>
    %c1_85 = arith.constant 1 : index
    %c0_86 = arith.constant 0 : index
    %c0_87 = arith.constant 0 : index
    %c0_88 = arith.constant 0 : index
    %173 = vector.load %arg3[%c1_85, %c0_86, %c0_87, %c0_88] : memref<2x4x16x16xf32, #tpu.memory_space<vmem>>, vector<1x1x16x16xf32>
    %174 = vector.shape_cast %173 : vector<1x1x16x16xf32> to vector<16x16xf32>
    %175 = arith.cmpf ogt, %172, %174 : vector<16x16xf32>
    %176 = arith.extui %175 : vector<16x16xi1> to vector<16x16xi32>
    %177 = arith.sitofp %176 : vector<16x16xi32> to vector<16x16xf32>
    %178 = arith.truncf %177 : vector<16x16xf32> to vector<16x16xbf16>
    %c0_89 = arith.constant 0 : index
    %c0_90 = arith.constant 0 : index
    %c0_91 = arith.constant 0 : index
    %179 = vector.load %arg6[%c0_89, %c0_90, %c0_91] : memref<2x16x16xbf16, #tpu.memory_space<vmem>>, vector<1x16x16xbf16>
    %180 = vector.shape_cast %179 : vector<1x16x16xbf16> to vector<16x16xbf16>
    %181 = arith.addf %180, %178 : vector<16x16xbf16>
    %c0_92 = arith.constant 0 : index
    %c0_93 = arith.constant 0 : index
    %c0_94 = arith.constant 0 : index
    %182 = vector.load %arg6[%c0_92, %c0_93, %c0_94] : memref<2x16x16xbf16, #tpu.memory_space<vmem>>, vector<1x16x16xbf16>
    %183 = vector.shape_cast %182 : vector<1x16x16xbf16> to vector<16x16xbf16>
    %184 = vector.shape_cast %181 : vector<16x16xbf16> to vector<1x16x16xbf16>
    tpu.vector_store %arg6[%c0_92, %c0_93, %c0_94], %184 {strides = array<i32>} : memref<2x16x16xbf16, #tpu.memory_space<vmem>>, vector<1x16x16xbf16>,
    %c0_95 = arith.constant 0 : index
    %c0_96 = arith.constant 0 : index
    %c0_97 = arith.constant 0 : index
    %185 = vector.load %arg7[%c0_95, %c0_96, %c0_97] : memref<2x16x16xbf16, #tpu.memory_space<vmem>>, vector<1x16x16xbf16>
    %186 = vector.shape_cast %185 : vector<1x16x16xbf16> to vector<16x16xbf16>
    %187 = arith.addf %186, %170 : vector<16x16xbf16>
    %c0_98 = arith.constant 0 : index
    %c0_99 = arith.constant 0 : index
    %c0_100 = arith.constant 0 : index
    %188 = vector.load %arg7[%c0_98, %c0_99, %c0_100] : memref<2x16x16xbf16, #tpu.memory_space<vmem>>, vector<1x16x16xbf16>
    %189 = vector.shape_cast %188 : vector<1x16x16xbf16> to vector<16x16xbf16>
    %190 = vector.shape_cast %187 : vector<16x16xbf16> to vector<1x16x16xbf16>
    tpu.vector_store %arg7[%c0_98, %c0_99, %c0_100], %190 {strides = array<i32>} : memref<2x16x16xbf16, #tpu.memory_space<vmem>>, vector<1x16x16xbf16>,
    %c2_i32_101 = arith.constant 2 : i32
    %191 = arith.muli %c2_i32_101, %arg0 : i32
    %c1_i32_102 = arith.constant 1 : i32
    %192 = arith.addi %191, %c1_i32_102 : i32
    %193 = vector.broadcast %192 : i32 to vector<16x16xi32>
    %194 = arith.cmpi eq, %133, %193 : vector<16x16xi32>
    %195 = arith.extui %194 : vector<16x16xi1> to vector<16x16xi32>
    %196 = arith.sitofp %195 : vector<16x16xi32> to vector<16x16xf32>
    %c1_i32_103 = arith.constant 1 : i32
    %197 = tpu.dynamic_rotate %196 by %c1_i32_103 dim 0 : vector<16x16xf32>, i32 -> vector<16x16xf32>
    %c15_i32_104 = arith.constant 15 : i32
    %198 = tpu.dynamic_rotate %196 by %c15_i32_104 dim 0 : vector<16x16xf32>, i32 -> vector<16x16xf32>
    %c1_i32_105 = arith.constant 1 : i32
    %199 = tpu.dynamic_rotate %196 by %c1_i32_105 dim 1 : vector<16x16xf32>, i32 -> vector<16x16xf32>
    %c15_i32_106 = arith.constant 15 : i32
    %200 = tpu.dynamic_rotate %196 by %c15_i32_106 dim 1 : vector<16x16xf32>, i32 -> vector<16x16xf32>
    %c1_i32_107 = arith.constant 1 : i32
    %201 = tpu.dynamic_rotate %197 by %c1_i32_107 dim 1 : vector<16x16xf32>, i32 -> vector<16x16xf32>
    %c15_i32_108 = arith.constant 15 : i32
    %202 = tpu.dynamic_rotate %197 by %c15_i32_108 dim 1 : vector<16x16xf32>, i32 -> vector<16x16xf32>
    %c1_i32_109 = arith.constant 1 : i32
    %203 = tpu.dynamic_rotate %198 by %c1_i32_109 dim 1 : vector<16x16xf32>, i32 -> vector<16x16xf32>
    %c15_i32_110 = arith.constant 15 : i32
    %204 = tpu.dynamic_rotate %198 by %c15_i32_110 dim 1 : vector<16x16xf32>, i32 -> vector<16x16xf32>
    %205 = arith.subf %202, %201 : vector<16x16xf32>
    %206 = arith.subf %200, %199 : vector<16x16xf32>
    %cst_111 = arith.constant 2.000000e+00 : f32
    %207 = vector.broadcast %cst_111 : f32 to vector<16x16xf32>
    %208 = arith.mulf %207, %206 : vector<16x16xf32>
    %209 = arith.addf %205, %208 : vector<16x16xf32>
    %210 = arith.subf %204, %203 : vector<16x16xf32>
    %211 = arith.addf %209, %210 : vector<16x16xf32>
    %212 = arith.subf %203, %201 : vector<16x16xf32>
    %213 = arith.subf %198, %197 : vector<16x16xf32>
    %cst_112 = arith.constant 2.000000e+00 : f32
    %214 = vector.broadcast %cst_112 : f32 to vector<16x16xf32>
    %215 = arith.mulf %214, %213 : vector<16x16xf32>
    %216 = arith.addf %212, %215 : vector<16x16xf32>
    %217 = arith.subf %204, %202 : vector<16x16xf32>
    %218 = arith.addf %216, %217 : vector<16x16xf32>
    %219 = math.absf %211 : vector<16x16xf32>
    %220 = math.absf %218 : vector<16x16xf32>
    %221 = arith.addf %219, %220 : vector<16x16xf32>
    %cst_113 = arith.constant 0.000000e+00 : f32
    %222 = vector.broadcast %cst_113 : f32 to vector<16x16xf32>
    %223 = arith.cmpf ogt, %221, %222 : vector<16x16xf32>
    %224 = arith.andi %15, %223 : vector<16x16xi1>
    %225 = arith.extui %224 : vector<16x16xi1> to vector<16x16xi32>
    %226 = arith.sitofp %225 : vector<16x16xi32> to vector<16x16xf32>
    %227 = arith.truncf %226 : vector<16x16xf32> to vector<16x16xbf16>
    %c1_114 = arith.constant 1 : index
    %c3_115 = arith.constant 3 : index
    %c0_116 = arith.constant 0 : index
    %c0_117 = arith.constant 0 : index
    %228 = vector.load %arg3[%c1_114, %c3_115, %c0_116, %c0_117] : memref<2x4x16x16xf32, #tpu.memory_space<vmem>>, vector<1x1x16x16xf32>
    %229 = vector.shape_cast %228 : vector<1x1x16x16xf32> to vector<16x16xf32>
    %c1_118 = arith.constant 1 : index
    %c2_119 = arith.constant 2 : index
    %c0_120 = arith.constant 0 : index
    %c0_121 = arith.constant 0 : index
    %230 = vector.load %arg3[%c1_118, %c2_119, %c0_120, %c0_121] : memref<2x4x16x16xf32, #tpu.memory_space<vmem>>, vector<1x1x16x16xf32>
    %231 = vector.shape_cast %230 : vector<1x1x16x16xf32> to vector<16x16xf32>
    %232 = arith.cmpf ogt, %229, %231 : vector<16x16xf32>
    %233 = arith.extui %232 : vector<16x16xi1> to vector<16x16xi32>
    %234 = arith.sitofp %233 : vector<16x16xi32> to vector<16x16xf32>
    %235 = arith.truncf %234 : vector<16x16xf32> to vector<16x16xbf16>
    %c1_122 = arith.constant 1 : index
    %c0_123 = arith.constant 0 : index
    %c0_124 = arith.constant 0 : index
    %236 = vector.load %arg6[%c1_122, %c0_123, %c0_124] : memref<2x16x16xbf16, #tpu.memory_space<vmem>>, vector<1x16x16xbf16>
    %237 = vector.shape_cast %236 : vector<1x16x16xbf16> to vector<16x16xbf16>
    %238 = arith.addf %237, %235 : vector<16x16xbf16>
    %c1_125 = arith.constant 1 : index
    %c0_126 = arith.constant 0 : index
    %c0_127 = arith.constant 0 : index
    %239 = vector.load %arg6[%c1_125, %c0_126, %c0_127] : memref<2x16x16xbf16, #tpu.memory_space<vmem>>, vector<1x16x16xbf16>
    %240 = vector.shape_cast %239 : vector<1x16x16xbf16> to vector<16x16xbf16>
    %241 = vector.shape_cast %238 : vector<16x16xbf16> to vector<1x16x16xbf16>
    tpu.vector_store %arg6[%c1_125, %c0_126, %c0_127], %241 {strides = array<i32>} : memref<2x16x16xbf16, #tpu.memory_space<vmem>>, vector<1x16x16xbf16>,
    %c1_128 = arith.constant 1 : index
    %c0_129 = arith.constant 0 : index
    %c0_130 = arith.constant 0 : index
    %242 = vector.load %arg7[%c1_128, %c0_129, %c0_130] : memref<2x16x16xbf16, #tpu.memory_space<vmem>>, vector<1x16x16xbf16>
    %243 = vector.shape_cast %242 : vector<1x16x16xbf16> to vector<16x16xbf16>
    %244 = arith.addf %243, %227 : vector<16x16xbf16>
    %c1_131 = arith.constant 1 : index
    %c0_132 = arith.constant 0 : index
    %c0_133 = arith.constant 0 : index
    %245 = vector.load %arg7[%c1_131, %c0_132, %c0_133] : memref<2x16x16xbf16, #tpu.memory_space<vmem>>, vector<1x16x16xbf16>
    %246 = vector.shape_cast %245 : vector<1x16x16xbf16> to vector<16x16xbf16>
    %247 = vector.shape_cast %244 : vector<16x16xbf16> to vector<1x16x16xbf16>
    tpu.vector_store %arg7[%c1_131, %c0_132, %c0_133], %247 {strides = array<i32>} : memref<2x16x16xbf16, #tpu.memory_space<vmem>>, vector<1x16x16xbf16>,
    %c0_i32_134 = arith.constant 0 : i32
    %248 = arith.cmpi eq, %arg1, %c0_i32_134 : i32
    %249 = arith.extui %248 : i1 to i32
    %c0_i32_135 = arith.constant 0 : i32
    %250 = arith.cmpi ne, %249, %c0_i32_135 : i32
    scf.if %250 {
      %c0_136 = arith.constant 0 : index
      %c0_137 = arith.constant 0 : index
      %251 = vector.load %arg4[%c0_136, %c0_137] : memref<16x16xbf16, #tpu.memory_space<vmem>>, vector<16x16xbf16>
      %252 = arith.extf %251 : vector<16x16xbf16> to vector<16x16xf32>
      %253 = arith.truncf %252 : vector<16x16xf32> to vector<16x16xbf16>
      %cst_138 = arith.constant dense<0.000000e+00> : vector<16xf32>
      %254 = vector.multi_reduction <add>, %252, %cst_138 [1] : vector<16x16xf32> to vector<16xf32>
      %255 = vector.shape_cast %254 : vector<16xf32> to vector<16x1xf32>
      %c0_139 = arith.constant 0 : index
      %c0_140 = arith.constant 0 : index
      %c0_141 = arith.constant 0 : index
      %256 = vector.load %arg6[%c0_139, %c0_140, %c0_141] : memref<2x16x16xbf16, #tpu.memory_space<vmem>>, vector<1x16x16xbf16>
      %257 = vector.shape_cast %256 : vector<1x16x16xbf16> to vector<16x16xbf16>
      %c0_142 = arith.constant 0 : index
      %c0_143 = arith.constant 0 : index
      %c0_144 = arith.constant 0 : index
      %258 = vector.load %arg7[%c0_142, %c0_143, %c0_144] : memref<2x16x16xbf16, #tpu.memory_space<vmem>>, vector<1x16x16xbf16>
      %259 = vector.shape_cast %258 : vector<1x16x16xbf16> to vector<16x16xbf16>
      %cst_145 = arith.constant dense<0.000000e+00> : vector<16x16xf32>
      %260 = tpu.matmul %253, %257, %cst_145 {dimension_numbers = #tpu.dot_dimension_numbers<[1], [0], [0], [1], [0, 0, 1, 1], [], []>} : vector<16x16xbf16>, vector<16x16xbf16>, vector<16x16xf32> -> vector<16x16xf32>
      %cst_146 = arith.constant dense<0.000000e+00> : vector<16x16xf32>
      %261 = tpu.matmul %259, %253, %cst_146 {dimension_numbers = #tpu.dot_dimension_numbers<[1], [0], [0], [1], [0, 0, 1, 1], [], []>} : vector<16x16xbf16>, vector<16x16xbf16>, vector<16x16xf32> -> vector<16x16xf32>
      %262 = arith.mulf %260, %261 : vector<16x16xf32>
      %263 = vector.shape_cast %262 : vector<16x16xf32> to vector<1x16x16xf32>
      %cst_147 = arith.constant dense<0.000000e+00> : vector<1xf32>
      %264 = vector.multi_reduction <add>, %263, %cst_147 [1, 2] : vector<1x16x16xf32> to vector<1xf32>
      %265 = vector.shape_cast %264 : vector<1xf32> to vector<1x1x1xf32>
      %266 = vector.extract %265[0, 0, 0] : f32 from vector<1x1x1xf32>
      %c0_148 = arith.constant 0 : index
      %c0_149 = arith.constant 0 : index
      %c0_150 = arith.constant 0 : index
      %267 = memref.load %arg5[%c0_148, %c0_149, %c0_150] : memref<1x3x2xf32, #tpu.memory_space<smem>>
      memref.store %266, %arg5[%c0_148, %c0_149, %c0_150] : memref<1x3x2xf32, #tpu.memory_space<smem>>
      %268 = arith.extf %257 : vector<16x16xbf16> to vector<16x16xf32>
      %269 = vector.shape_cast %268 : vector<16x16xf32> to vector<1x16x16xf32>
      %cst_151 = arith.constant dense<0.000000e+00> : vector<1xf32>
      %270 = vector.multi_reduction <add>, %269, %cst_151 [1, 2] : vector<1x16x16xf32> to vector<1xf32>
      %271 = vector.shape_cast %270 : vector<1xf32> to vector<1x1x1xf32>
      %272 = vector.extract %271[0, 0, 0] : f32 from vector<1x1x1xf32>
      %c0_152 = arith.constant 0 : index
      %c1_153 = arith.constant 1 : index
      %c0_154 = arith.constant 0 : index
      %273 = memref.load %arg5[%c0_152, %c1_153, %c0_154] : memref<1x3x2xf32, #tpu.memory_space<smem>>
      memref.store %272, %arg5[%c0_152, %c1_153, %c0_154] : memref<1x3x2xf32, #tpu.memory_space<smem>>
      %274 = vector.broadcast %255 : vector<16x1xf32> to vector<16x16xf32>
      %275 = arith.mulf %261, %274 : vector<16x16xf32>
      %276 = vector.shape_cast %275 : vector<16x16xf32> to vector<1x16x16xf32>
      %cst_155 = arith.constant dense<0.000000e+00> : vector<1xf32>
      %277 = vector.multi_reduction <add>, %276, %cst_155 [1, 2] : vector<1x16x16xf32> to vector<1xf32>
      %278 = vector.shape_cast %277 : vector<1xf32> to vector<1x1x1xf32>
      %279 = vector.extract %278[0, 0, 0] : f32 from vector<1x1x1xf32>
      %c0_156 = arith.constant 0 : index
      %c2_157 = arith.constant 2 : index
      %c0_158 = arith.constant 0 : index
      %280 = memref.load %arg5[%c0_156, %c2_157, %c0_158] : memref<1x3x2xf32, #tpu.memory_space<smem>>
      memref.store %279, %arg5[%c0_156, %c2_157, %c0_158] : memref<1x3x2xf32, #tpu.memory_space<smem>>
      %c1_159 = arith.constant 1 : index
      %c0_160 = arith.constant 0 : index
      %c0_161 = arith.constant 0 : index
      %281 = vector.load %arg6[%c1_159, %c0_160, %c0_161] : memref<2x16x16xbf16, #tpu.memory_space<vmem>>, vector<1x16x16xbf16>
      %282 = vector.shape_cast %281 : vector<1x16x16xbf16> to vector<16x16xbf16>
      %c1_162 = arith.constant 1 : index
      %c0_163 = arith.constant 0 : index
      %c0_164 = arith.constant 0 : index
      %283 = vector.load %arg7[%c1_162, %c0_163, %c0_164] : memref<2x16x16xbf16, #tpu.memory_space<vmem>>, vector<1x16x16xbf16>
      %284 = vector.shape_cast %283 : vector<1x16x16xbf16> to vector<16x16xbf16>
      %cst_165 = arith.constant dense<0.000000e+00> : vector<16x16xf32>
      %285 = tpu.matmul %253, %282, %cst_165 {dimension_numbers = #tpu.dot_dimension_numbers<[1], [0], [0], [1], [0, 0, 1, 1], [], []>} : vector<16x16xbf16>, vector<16x16xbf16>, vector<16x16xf32> -> vector<16x16xf32>
      %cst_166 = arith.constant dense<0.000000e+00> : vector<16x16xf32>
      %286 = tpu.matmul %284, %253, %cst_166 {dimension_numbers = #tpu.dot_dimension_numbers<[1], [0], [0], [1], [0, 0, 1, 1], [], []>} : vector<16x16xbf16>, vector<16x16xbf16>, vector<16x16xf32> -> vector<16x16xf32>
      %287 = arith.mulf %285, %286 : vector<16x16xf32>
      %288 = vector.shape_cast %287 : vector<16x16xf32> to vector<1x16x16xf32>
      %cst_167 = arith.constant dense<0.000000e+00> : vector<1xf32>
      %289 = vector.multi_reduction <add>, %288, %cst_167 [1, 2] : vector<1x16x16xf32> to vector<1xf32>
      %290 = vector.shape_cast %289 : vector<1xf32> to vector<1x1x1xf32>
      %291 = vector.extract %290[0, 0, 0] : f32 from vector<1x1x1xf32>
      %c0_168 = arith.constant 0 : index
      %c0_169 = arith.constant 0 : index
      %c1_170 = arith.constant 1 : index
      %292 = memref.load %arg5[%c0_168, %c0_169, %c1_170] : memref<1x3x2xf32, #tpu.memory_space<smem>>
      memref.store %291, %arg5[%c0_168, %c0_169, %c1_170] : memref<1x3x2xf32, #tpu.memory_space<smem>>
      %293 = arith.extf %282 : vector<16x16xbf16> to vector<16x16xf32>
      %294 = vector.shape_cast %293 : vector<16x16xf32> to vector<1x16x16xf32>
      %cst_171 = arith.constant dense<0.000000e+00> : vector<1xf32>
      %295 = vector.multi_reduction <add>, %294, %cst_171 [1, 2] : vector<1x16x16xf32> to vector<1xf32>
      %296 = vector.shape_cast %295 : vector<1xf32> to vector<1x1x1xf32>
      %297 = vector.extract %296[0, 0, 0] : f32 from vector<1x1x1xf32>
      %c0_172 = arith.constant 0 : index
      %c1_173 = arith.constant 1 : index
      %c1_174 = arith.constant 1 : index
      %298 = memref.load %arg5[%c0_172, %c1_173, %c1_174] : memref<1x3x2xf32, #tpu.memory_space<smem>>
      memref.store %297, %arg5[%c0_172, %c1_173, %c1_174] : memref<1x3x2xf32, #tpu.memory_space<smem>>
      %299 = vector.broadcast %255 : vector<16x1xf32> to vector<16x16xf32>
      %300 = arith.mulf %286, %299 : vector<16x16xf32>
      %301 = vector.shape_cast %300 : vector<16x16xf32> to vector<1x16x16xf32>
      %cst_175 = arith.constant dense<0.000000e+00> : vector<1xf32>
      %302 = vector.multi_reduction <add>, %301, %cst_175 [1, 2] : vector<1x16x16xf32> to vector<1xf32>
      %303 = vector.shape_cast %302 : vector<1xf32> to vector<1x1x1xf32>
      %304 = vector.extract %303[0, 0, 0] : f32 from vector<1x1x1xf32>
      %c0_176 = arith.constant 0 : index
      %c2_177 = arith.constant 2 : index
      %c1_178 = arith.constant 1 : index
      %305 = memref.load %arg5[%c0_176, %c2_177, %c1_178] : memref<1x3x2xf32, #tpu.memory_space<smem>>
      memref.store %304, %arg5[%c0_176, %c2_177, %c1_178] : memref<1x3x2xf32, #tpu.memory_space<smem>>
    } else {
    }
    return
  }
  func.func @transform_0(%arg0: i32, %arg1: i32) -> (i32, i32, i32) {
    %c0_i32 = arith.constant 0 : i32
    %c0_i32_0 = arith.constant 0 : i32
    %c0_i32_1 = arith.constant 0 : i32
    return %arg1, %c0_i32, %c0_i32_0 : i32, i32, i32
  }
  func.func @transform_1(%arg0: i32, %arg1: i32) -> (i32, i32, i32, i32) {
    %c0_i32 = arith.constant 0 : i32
    %c0_i32_0 = arith.constant 0 : i32
    %c0_i32_1 = arith.constant 0 : i32
    return %arg1, %arg0, %c0_i32, %c0_i32_0 : i32, i32, i32, i32
  }
  func.func @transform_2(%arg0: i32, %arg1: i32) -> (i32, i32) {
    %c0_i32 = arith.constant 0 : i32
    %c0_i32_0 = arith.constant 0 : i32
    %c0_i32_1 = arith.constant 0 : i32
    return %c0_i32, %c0_i32_0 : i32, i32
  }
  func.func @transform_3(%arg0: i32, %arg1: i32) -> (i32, i32, i32) {
    %c0_i32 = arith.constant 0 : i32
    %c0_i32_0 = arith.constant 0 : i32
    %c0_i32_1 = arith.constant 0 : i32
    return %arg0, %c0_i32, %c0_i32_0 : i32, i32, i32
  }
}

</mosaic_0001>

<llo_original>
// kernel: gradient_loss.1
$region0: #{gradient_loss.1}
  #allocation0 [shape = 'u32[]', space=smem, size = 0x4, offset = 0x4, fixed_abs, tag = 'smem constant byte address 0x4 - core index']
  #allocation1 [shape = 'u32[144,128]{1,0:T(1,128)}', space=vmem, size = 0x12000, scoped, tag = 'internal scratch']
  #allocation2 [shape = 'bf16[2,16,16]{2,1,0:T(16,128)(2,1)}', space=vmem, size = 0x2000, scoped, tag = 'scratch operand']
  #allocation3 [shape = 'bf16[2,16,16]{2,1,0:T(16,128)(2,1)}', space=vmem, size = 0x2000, scoped, tag = 'scratch operand']
  #allocation10 [shape = 's32[]', space=sflag, size = 0x4, offset = 0, fixed_abs, tag = 'sflag constant byte address 0x0 - dummy sync flag']
  %s0 = inlined_call_operand.hbm [shape: s32[2,16,16], index: 0, kind: input, shape index: {}]
  %s1 = inlined_call_operand.hbm [shape: f32[2,8,16,16], index: 1, kind: input, shape index: {}]
  %s2 = inlined_call_operand.vmem [shape: bf16[16,16], index: 2, kind: input, shape index: {}]
  %s3 = inlined_call_operand.vmem [shape: f32[2,3,2], index: 3, kind: output, shape index: {}]
  %s4 = sld [smem:[#allocation0]]
  $region61: #{gradient_loss.1} parent=0
    _
  %s6 = ssub.s32 1, %s4
  %s7 = scalar_select 0, %s6, %s4
  $region1: #{gradient_loss.1} parent=0
    #allocation4 [shape = 'u8[16384]{0}', space=vmem, size = 0x4000, scoped, tag = 'input window, operand 0, single buffered']
    #allocation5 [shape = 's32[2]{0}', space=sflag, size = 0x8, scoped, tag = 'scoped memory for gradient_loss.1']
    #allocation6 [shape = 's32[2]{0}', space=sflag, size = 0x8, scoped, tag = 'scoped memory for gradient_loss.1']
    #allocation7 [shape = 'u8[131072]{0}', space=vmem, size = 0x20000, scoped, tag = 'input window, operand 1']
    #allocation8 [shape = 's32[2]{0}', space=sflag, size = 0x8, scoped, tag = 'scoped memory for gradient_loss.1']
    #allocation9 [shape = 'u8[4096]{0}', space=smem, size = 0x1000, scoped, tag = 'output window, operand 0']
    %8 = vsyncpa [#allocation5], 0
    %9 = vsyncpa [#allocation8], 0
    %s10 = scalar_lea.sflag [#allocation8], 1
    %11 = vsyncpa %s10, 0
    %12 = vsyncpa [#allocation6], 0
    %s13 = scalar_lea.sflag [#allocation6], 1
    %14 = vsyncpa %s13, 0
    loop: start=0, step=1, limit=4
    $region2: #{gradient_loss.1} parent=1 // loop_pre_header
      _
    $region3: #{gradient_loss.1} parent=1 // loop_header
      %s16 = sphi 0, %s20
      %p17 = scmp.ge.s32.totalorder %s16, 4
      %s23 = sphi 0, %s35
      %s24 = sphi 0, %s31
      %s25 = sphi 0, %s23
      %s26 = sphi 0, %s24
      %s27 = sphi 0, %s25
      %s28 = sphi 0, %s26
      %s38 = sphi 0, %s40
      %s41 = sphi 0, %s38
      %s42 = sphi 0, %s41
      %s58 = sphi 0, %s42
      %s66 = sphi 0, %s68
      %s69 = sphi 0, %s66
      %s70 = sphi 0, %s69
      %s86 = sphi 0, %s70
      %s90 = sphi 0, %s90
      %s92 = sphi 0, %s90
      %s93 = sphi 0, %s92
      %s107 = sphi 0, %s93
      %s113 = sphi 0, %s115
      %s116 = sphi 0, %s113
      %s117 = sphi 0, %s116
      %s133 = sphi 0, %s117
    $region4: #{gradient_loss.1} parent=1 // loop_header_branch
      %19 = sbr.rel (%p17) target = $region8
    $region5: #{gradient_loss.1} parent=1 // loop_body
      %s21 = ssub.s32 %s16, 1
      %s22 = ssub.s32 %s16, 2
      %s29 = sadd.s32 1, %s24
      %p30 = scmp.ge.s32.totalorder %s29, 1
      %s31 = scalar_select %p30, 0, %s29
      %s32 = sadd.s32 1, %s23
      %s33 = scalar_select %p30, %s32, %s23
      %p34 = scmp.ge.s32.totalorder %s33, 2
      %s35 = scalar_select %p34, 0, %s33
      %s36 = ssub.s32 %s24, %s31
      %p37 = scmp.eq.s32.totalorder %s36, 0
      %s39 = sadd.s32 %s38, 1
      %s40 = scalar_select %p37, %s38, %s39
      %p43 = pneg %p37
      %p44 = scmp.eq.s32.totalorder %s16, 1
      %p45 = por %p43, %p44
      %p46 = scmp.ne.s32.totalorder %s38, %s41
      %p47 = scmp.eq.s32.totalorder %s16, 0
      %p48 = por %p46, %p47
      %p49 = scmp.ne.s32.totalorder %s38, %s41
      %p50 = scmp.eq.s32.totalorder %s21, 1
      %p51 = por %p49, %p50
      %p52 = scmp.ne.s32.totalorder %s41, %s42
      %p53 = scmp.eq.s32.totalorder %s21, 0
      %p54 = por %p52, %p53
      %p55 = scmp.ne.s32.totalorder %s41, %s42
      %p56 = scmp.eq.s32.totalorder %s22, 1
      %p57 = por %p55, %p56
      %p59 = scmp.ne.s32.totalorder %s42, %s58
      %p60 = scmp.eq.s32.totalorder %s22, 0
      %p61 = por %p59, %p60
      %s62 = ssub.s32 %s24, %s31
      %s63 = ssub.s32 %s23, %s35
      %s64 = sor.u32 %s62, %s63
      %p65 = scmp.eq.s32.totalorder %s64, 0
      %s67 = sadd.s32 %s66, 1
      %s68 = scalar_select %p65, %s66, %s67
      %p71 = pneg %p65
      %p72 = scmp.eq.s32.totalorder %s16, 1
      %p73 = por %p71, %p72
      %p74 = scmp.ne.s32.totalorder %s66, %s69
      %p75 = scmp.eq.s32.totalorder %s16, 0
      %p76 = por %p74, %p75
      %p77 = scmp.ne.s32.totalorder %s66, %s69
      %p78 = scmp.eq.s32.totalorder %s21, 1
      %p79 = por %p77, %p78
      %p80 = scmp.ne.s32.totalorder %s69, %s70
      %p81 = scmp.eq.s32.totalorder %s21, 0
      %p82 = por %p80, %p81
      %p83 = scmp.ne.s32.totalorder %s69, %s70
      %p84 = scmp.eq.s32.totalorder %s22, 1
      %p85 = por %p83, %p84
      %p87 = scmp.ne.s32.totalorder %s70, %s86
      %p88 = scmp.eq.s32.totalorder %s22, 0
      %p89 = por %p87, %p88
      %s91 = sadd.s32 %s90, 1
      %p94 = scmp.eq.s32.totalorder %s16, 1
      %p95 = scmp.ne.s32.totalorder %s90, %s92
      %p96 = scmp.eq.s32.totalorder %s16, 0
      %p97 = por %p95, %p96
      %p98 = scmp.ne.s32.totalorder %s90, %s92
      %p99 = scmp.eq.s32.totalorder %s21, 1
      %p100 = por %p98, %p99
      %p101 = scmp.ne.s32.totalorder %s92, %s93
      %p102 = scmp.eq.s32.totalorder %s21, 0
      %p103 = por %p101, %p102
      %p104 = scmp.ne.s32.totalorder %s92, %s93
      %p105 = scmp.eq.s32.totalorder %s22, 1
      %p106 = por %p104, %p105
      %p108 = scmp.ne.s32.totalorder %s93, %s107
      %p109 = scmp.eq.s32.totalorder %s22, 0
      %p110 = por %p108, %p109
      %s111 = ssub.s32 %s23, %s35
      %p112 = scmp.eq.s32.totalorder %s111, 0
      %s114 = sadd.s32 %s113, 1
      %s115 = scalar_select %p112, %s113, %s114
      %p118 = pneg %p112
      %p119 = scmp.eq.s32.totalorder %s16, 1
      %p120 = por %p118, %p119
      %p121 = scmp.ne.s32.totalorder %s113, %s116
      %p122 = scmp.eq.s32.totalorder %s16, 0
      %p123 = por %p121, %p122
      %p124 = scmp.ne.s32.totalorder %s113, %s116
      %p125 = scmp.eq.s32.totalorder %s21, 1
      %p126 = por %p124, %p125
      %p127 = scmp.ne.s32.totalorder %s116, %s117
      %p128 = scmp.eq.s32.totalorder %s21, 0
      %p129 = por %p127, %p128
      %p130 = scmp.ne.s32.totalorder %s116, %s117
      %p131 = scmp.eq.s32.totalorder %s22, 1
      %p132 = por %p130, %p131
      %p134 = scmp.ne.s32.totalorder %s117, %s133
      %p135 = scmp.eq.s32.totalorder %s22, 0
      %p136 = por %p134, %p135
      %p137 = scmp.le.s32.totalorder 1, %s16
      %p138 = scmp.lt.s32.totalorder %s16, 3
      %p139 = pnand %p137, %p138
      %p140 = pneg %p139
      // Predicated region
      $region9: #{gradient_loss.1} parent=5 // pred_check
        _
      $region10: #{gradient_loss.1} parent=5 // pred_check_branch
        %142 = sbr.rel (%p139) target = $region12
      $region11: #{gradient_loss.1} parent=5 // pred_region
        %s143 = ssub.s32 %s16, 1
        // Predicated region
        $region13: #{gradient_loss.1} parent=11 // pred_check
          %p144 = pneg %p54
        $region14: #{gradient_loss.1} parent=11 // pred_check_branch
          %146 = sbr.rel (%p144) target = $region16
        $region15: #{gradient_loss.1} parent=11 // pred_region
          %s147 = smul.u32 2, %s26
          %s149 = ssub.s32 512, 512
          %150 = vsyncadd [#allocation5], %s149
          %s151 = smul.addr %s147, 2
          %s152 = smul.addr %s151, 128
          %s153 = scalar_lea.hbm %s0, %s152
          %s154 = sshll.u32 [#allocation4], 4
          %s155 = int_to_ptr.vmem [resolvable:$true] %s154
          %160 = dma.hbm_to_vmem [thread:$0]  %s153, 512, %s155, [#allocation5], 128, 128, 8
        $region16: #{gradient_loss.1} parent=11 // pred_fallthru
          _
        // Predicated region
        $region17: #{gradient_loss.1} parent=11 // pred_check
          %p161 = pneg %p103
        $region18: #{gradient_loss.1} parent=11 // pred_check_branch
          %163 = sbr.rel (%p161) target = $region20
        $region19: #{gradient_loss.1} parent=11 // pred_region
          _
        $region20: #{gradient_loss.1} parent=11 // pred_fallthru
          _
      $region12: #{gradient_loss.1} parent=5 // pred_fallthru
        _
      %p164 = scmp.lt.s32.totalorder %s16, 2
      // Predicated region
      $region21: #{gradient_loss.1} parent=5 // pred_check
        %p165 = pneg %p164
      $region22: #{gradient_loss.1} parent=5 // pred_check_branch
        %167 = sbr.rel (%p165) target = $region24
      $region23: #{gradient_loss.1} parent=5 // pred_region
        // Predicated region
        $region25: #{gradient_loss.1} parent=23 // pred_check
          %p168 = pneg %p76
        $region26: #{gradient_loss.1} parent=23 // pred_check_branch
          %170 = sbr.rel (%p168) target = $region28
        $region27: #{gradient_loss.1} parent=23 // pred_region
          #allocation11 [shape = 'u32[6]{0}', space=smem, size = 0x18, scoped, tag = 'DMA stride descriptor']
          %s171 = sand.u32 %s66, 1
          %s172 = scalar_lea.sflag [#allocation8], %s171
          %s173 = sand.u32 %s66, 1
          %s174 = smul.addr %s173, 128
          %s175 = scalar_lea.vmem [#allocation7], %s174
          %s176 = smul.u32 2, %s24
          %s177 = smul.u32 4, %s23
          %s179 = ssub.s32 2048, 2048
          %180 = vsyncadd %s172, %s179
          %s181 = smul.addr %s177, 2
          %s182 = smul.addr %s176, 16
          %s183 = sadd.s32 %s181, %s182
          %s184 = smul.addr %s183, 128
          %s185 = scalar_lea.hbm %s1, %s184
          %s187 = sshll.u32 1, 14
          %s188 = sxor.u32 4294967295, %s187
          %s190 = sld [smem:[#allocation0]]
          %s191 = sadd.s32 2, %s190
          %s193 = sshll.u32 7, 26
          %s194 = sxor.u32 4294967295, %s193
          %s195 = sand.u32 0, %s194
          %s196 = sshll.u32 %s191, 26
          %s197 = sor.u32 %s195, %s196
          %s198 = sshll.u32 %s175, 4
          %s199 = int_to_ptr.vmem [resolvable:$true] %s198
          %205 = sst [smem:[#allocation11]] 2048
          %s206 = scalar_lea.smem [#allocation11], 1
          %207 = sst [smem:[%s206]] 1024
          %s208 = scalar_lea.smem [#allocation11], 2
          %209 = sst [smem:[%s208]] 8
          %s210 = scalar_lea.smem [#allocation11], 3
          %211 = sst [smem:[%s210]] 128
          %s212 = scalar_lea.smem [#allocation11], 4
          %213 = sst [smem:[%s212]] 128
          %s214 = scalar_lea.smem [#allocation11], 5
          %215 = sst [smem:[%s214]] 8
          %217 = dma.general %s185, 2048, %s199, %s172, [#allocation10], [#allocation11], %s197, 0
        $region28: #{gradient_loss.1} parent=23 // pred_fallthru
          _
      $region24: #{gradient_loss.1} parent=5 // pred_fallthru
        _
      %p218 = scmp.le.s32.totalorder 1, %s16
      %p219 = scmp.lt.s32.totalorder %s16, 3
      %p220 = pnand %p218, %p219
      %p221 = pneg %p220
      // Predicated region
      $region29: #{gradient_loss.1} parent=5 // pred_check
        _
      $region30: #{gradient_loss.1} parent=5 // pred_check_branch
        %223 = sbr.rel (%p220) target = $region32
      $region31: #{gradient_loss.1} parent=5 // pred_region
        %s224 = ssub.s32 %s16, 1
        // Predicated region
        $region33: #{gradient_loss.1} parent=31 // pred_check
          %p225 = pneg %p54
        $region34: #{gradient_loss.1} parent=31 // pred_check_branch
          %227 = sbr.rel (%p225) target = $region36
        $region35: #{gradient_loss.1} parent=31 // pred_region
          %228 = dma.done [#allocation5], 512
        $region36: #{gradient_loss.1} parent=31 // pred_fallthru
          _
        %s229 = sand.u32 %s69, 1
        %s230 = scalar_lea.sflag [#allocation8], %s229
        %s231 = sand.u32 %s69, 1
        %s232 = smul.addr %s231, 128
        %s233 = scalar_lea.vmem [#allocation7], %s232
        // Predicated region
        $region37: #{gradient_loss.1} parent=31 // pred_check
          %p234 = pneg %p82
        $region38: #{gradient_loss.1} parent=31 // pred_check_branch
          %236 = sbr.rel (%p234) target = $region40
        $region39: #{gradient_loss.1} parent=31 // pred_region
          %237 = dma.done %s230, 2048
        $region40: #{gradient_loss.1} parent=31 // pred_fallthru
          _
        %p238 = pneg %p54
        %p239 = pneg %p51
        %s240 = sand.u32 %s69, 1
        %s241 = scalar_lea.sflag [#allocation8], %s240
        %s242 = sand.u32 %s69, 1
        %s243 = smul.addr %s242, 128
        %s244 = scalar_lea.vmem [#allocation7], %s243
        %p245 = pneg %p82
        %p246 = pneg %p79
        %p247 = pneg %p103
        %p248 = pneg %p100
        %p249 = pneg %p129
        %p250 = pneg %p126
        %s251 = sand.u32 %s116, 1
        %s252 = scalar_lea.sflag [#allocation6], %s251
        %s253 = sand.u32 %s116, 1
        %s254 = smul.addr %s253, 512
        %s255 = scalar_lea.smem [#allocation9], %s254
        %s256 = smul.u32 2, %s26
        %s257 = smul.u32 2, %s26
        %s258 = smul.u32 4, %s25
        %p260 = scmp.eq.s32.totalorder %s26, 0
        // Predicated region
        $region41: #{gradient_loss.1} parent=31 // pred_check
          %p261 = pneg %p260
        $region42: #{gradient_loss.1} parent=31 // pred_check_branch
          %263 = sbr.rel (%p261) target = $region44
        $region43: #{gradient_loss.1} parent=31 // pred_region
          %vm264 = vcmask 130048
          %265 = vst.msk [vmem:[#allocation2] sm:$0xff] %vm264, 0
          %266 = vst.msk [vmem:[#allocation2 + $0x8] sm:$0xff] %vm264, 0
          %267 = vst.msk [vmem:[#allocation3] sm:$0xff] %vm264, 0
          %268 = vst.msk [vmem:[#allocation3 + $0x8] sm:$0xff] %vm264, 0
        $region44: #{gradient_loss.1} parent=31 // pred_fallthru
          _
        %v269 = vlaneseq
        %v270 = vshrl.u32 %v269, 7
        %v271 = vadd.s32 %v270, 8
        %v272 = vlaneseq
        %v273 = vand.u32 %v272, 127
        %vm274 = vcmp.ge.s32.totalorder %v270, 1
        %vm275 = vcmp.ge.s32.totalorder %v271, 1
        %vm276 = vcmp.le.s32.totalorder %v270, 14
        %vm277 = vcmp.le.s32.totalorder %v271, 14
        %vm278 = vmand %vm274, %vm276
        %vm279 = vmand %vm275, %vm277
        %vm280 = vcmp.ge.s32.totalorder %v273, 1
        %vm281 = vmand %vm278, %vm280
        %vm282 = vmand %vm279, %vm280
        %vm283 = vcmp.le.s32.totalorder %v273, 14
        %vm284 = vmand %vm281, %vm283
        %vm285 = vmand %vm282, %vm283
        %v286 = vld [vmem:[#allocation4] sm:$0xff]
        %v287 = vld [vmem:[#allocation4 + $0x8] sm:$0xff]
        %s288 = smul.u32 %s25, 2
        %v289 = vstv %s288
        %vm290 = vcmp.eq.s32.totalorder %v286, %v289
        %vm291 = vcmp.eq.s32.totalorder %v287, %v289
        %v292 = vsel %vm290, 1, 0
        %v293 = vsel %vm291, 1, 0
        %v294 = vcvt.s32.f32 %v292
        %v295 = vcvt.s32.f32 %v293
        %v296 = vrot.slane %v294, 7
        %v297 = vrot.slane %v295, 7
        %vm298 = vcmp.lt.s32.totalorder %v270, 1
        %v299 = vsel %vm298, %v296, %v297
        %v300 = vsel %vm298, %v297, %v296
        %v301 = vrot.slane %v294, 1
        %v302 = vrot.slane %v295, 1
        %vm303 = vcmp.lt.s32.totalorder %v270, 7
        %v304 = vsel %vm303, %v301, %v302
        %v305 = vsel %vm303, %v302, %v301
        %vm306 = vcmask 1047680
        %307 = vrot.lane.b32.xlu0 %v294, 16
        %v308 = vpop.permute.xlu0 %307
        %v309 = vsel %vm306, %v308, %v294
        %310 = vrot.lane.b32.xlu0 %v295, 16
        %v311 = vpop.permute.xlu0 %310
        %v312 = vsel %vm306, %v311, %v295
        %313 = vrot.lane.b32.xlu0 %v309, 16
        %v314 = vpop.permute.xlu0 %313
        %315 = vrot.lane.b32.xlu0 %v312, 16
        %v316 = vpop.permute.xlu0 %315
        %v317 = vsel %vm306, %v314, %v294
        %v318 = vsel %vm306, %v316, %v295
        %319 = vrot.lane.b32.xlu0 %v300, 16
        %v320 = vpop.permute.xlu0 %319
        %v321 = vsel %vm306, %v320, %v300
        %322 = vrot.lane.b32.xlu0 %v299, 16
        %v323 = vpop.permute.xlu0 %322
        %v324 = vsel %vm306, %v323, %v299
        %325 = vrot.lane.b32.xlu0 %v321, 16
        %v326 = vpop.permute.xlu0 %325
        %327 = vrot.lane.b32.xlu0 %v324, 16
        %v328 = vpop.permute.xlu0 %327
        %v329 = vsel %vm306, %v326, %v300
        %v330 = vsel %vm306, %v328, %v299
        %331 = vrot.lane.b32.xlu0 %v304, 16
        %v332 = vpop.permute.xlu0 %331
        %v333 = vsel %vm306, %v332, %v304
        %334 = vrot.lane.b32.xlu0 %v305, 16
        %v335 = vpop.permute.xlu0 %334
        %v336 = vsel %vm306, %v335, %v305
        %337 = vrot.lane.b32.xlu0 %v333, 16
        %v338 = vpop.permute.xlu0 %337
        %339 = vrot.lane.b32.xlu0 %v336, 16
        %v340 = vpop.permute.xlu0 %339
        %v341 = vsel %vm306, %v338, %v304
        %v342 = vsel %vm306, %v340, %v305
        %345 = vrot.lane.b32.xlu0 %v329, 114
        %v346 = vpop.permute.xlu0 %345
        %347 = vrot.lane.b32.xlu0 %v330, 114
        %v348 = vpop.permute.xlu0 %347
        %v351 = vsub.f32 %v329, %v346
        %v352 = vsub.f32 %v330, %v348
        %355 = vrot.lane.b32.xlu0 %v317, 114
        %v356 = vpop.permute.xlu0 %355
        %357 = vrot.lane.b32.xlu0 %v318, 114
        %v358 = vpop.permute.xlu0 %357
        %v361 = vsub.f32 %v317, %v356
        %v362 = vsub.f32 %v318, %v358
        %v363 = vmul.f32 %v361, 2.0
        %v364 = vmul.f32 %v362, 2.0
        %v365 = vadd.f32 %v351, %v363
        %v366 = vadd.f32 %v352, %v364
        %369 = vrot.lane.b32.xlu0 %v341, 114
        %v370 = vpop.permute.xlu0 %369
        %371 = vrot.lane.b32.xlu0 %v342, 114
        %v372 = vpop.permute.xlu0 %371
        %v375 = vsub.f32 %v341, %v370
        %v376 = vsub.f32 %v342, %v372
        %v377 = vadd.f32 %v365, %v375
        %v378 = vadd.f32 %v366, %v376
        %v379 = vsub.f32 %v341, %v329
        %v380 = vsub.f32 %v342, %v330
        %v381 = vsub.f32 %v304, %v300
        %v382 = vsub.f32 %v305, %v299
        %v383 = vmul.f32 %v381, 2.0
        %v384 = vmul.f32 %v382, 2.0
        %387 = vrot.lane.b32.xlu0 %v383, 15
        %v388 = vpop.permute.xlu0 %387
        %389 = vrot.lane.b32.xlu0 %v384, 15
        %v390 = vpop.permute.xlu0 %389
        %v393 = vadd.f32 %v379, %v388
        %v394 = vadd.f32 %v380, %v390
        %397 = vrot.lane.b32.xlu0 %v379, 14
        %v398 = vpop.permute.xlu0 %397
        %399 = vrot.lane.b32.xlu0 %v380, 14
        %v400 = vpop.permute.xlu0 %399
        %v403 = vadd.f32 %v393, %v398
        %v404 = vadd.f32 %v394, %v400
        %v405 = vand.u32 2147483647, %v377
        %v406 = vand.u32 2147483647, %v378
        %v407 = vand.u32 2147483647, %v403
        %v408 = vand.u32 2147483647, %v404
        %411 = vrot.lane.b32.xlu0 %v407, 114
        %v412 = vpop.permute.xlu0 %411
        %413 = vrot.lane.b32.xlu0 %v408, 114
        %v414 = vpop.permute.xlu0 %413
        %v417 = vadd.f32 %v405, %v412
        %v418 = vadd.f32 %v406, %v414
        %vm419 = vcmp.gt.f32.partialorder %v417, 0.0
        %vm420 = vcmp.gt.f32.partialorder %v418, 0.0
        %v421 = vsel %vm419, 1, 0
        %v422 = vsel %vm420, 1, 0
        %423 = vrot.lane.b32.xlu0 %v421, 127
        %v424 = vpop.permute.xlu0 %423
        %425 = vrot.lane.b32.xlu0 %v422, 127
        %v426 = vpop.permute.xlu0 %425
        %vm427 = vcmp.ne.s32.totalorder %v424, 0
        %vm428 = vcmp.ne.s32.totalorder %v426, 0
        %vm429 = vmand %vm284, %vm427
        %vm430 = vmand %vm285, %vm428
        %v431 = vsel %vm429, 1, 0
        %v432 = vsel %vm430, 1, 0
        %v433 = vcvt.s32.f32 %v431
        %v434 = vcvt.s32.f32 %v432
        %v435 = vpack.c.bf16 %v434, %v433
        %s436 = scalar_lea.vmem %s233, 16 [#allocation7]
        %v437 = vld [vmem:[%s436] sm:$0xff]
        %v438 = vld [vmem:[%s436 + $0x8] sm:$0xff]
        %v439 = vld [vmem:[%s233] sm:$0xff]
        %v440 = vld [vmem:[%s233 + $0x8] sm:$0xff]
        %vm441 = vcmp.gt.f32.partialorder %v437, %v439
        %vm442 = vcmp.gt.f32.partialorder %v438, %v440
        %v443 = vsel %vm441, 1, 0
        %v444 = vsel %vm442, 1, 0
        %v445 = vcvt.s32.f32 %v443
        %v446 = vcvt.s32.f32 %v444
        %v447 = vpack.c.bf16 %v446, %v445
        %v448 = vld [vmem:[#allocation2] sm:$0xff]
        %v449 = vadd.bf16 %v448, %v447
        %vm450 = vcmask 130048
        %451 = vst.msk [vmem:[#allocation2] sm:$0xff] %vm450, %v449
        %v452 = vld [vmem:[#allocation3] sm:$0xff]
        %v453 = vadd.bf16 %v452, %v435
        %454 = vst.msk [vmem:[#allocation3] sm:$0xff] %vm450, %v453
        %s455 = sadd.s32 %s288, 1
        %v456 = vstv %s455
        %vm457 = vcmp.eq.s32.totalorder %v286, %v456
        %vm458 = vcmp.eq.s32.totalorder %v287, %v456
        %v459 = vsel %vm457, 1, 0
        %v460 = vsel %vm458, 1, 0
        %v461 = vcvt.s32.f32 %v459
        %v462 = vcvt.s32.f32 %v460
        %v463 = vrot.slane %v461, 7
        %v464 = vrot.slane %v462, 7
        %v465 = vsel %vm298, %v463, %v464
        %v466 = vsel %vm298, %v464, %v463
        %v467 = vrot.slane %v461, 1
        %v468 = vrot.slane %v462, 1
        %v469 = vsel %vm303, %v467, %v468
        %v470 = vsel %vm303, %v468, %v467
        %471 = vrot.lane.b32.xlu0 %v461, 16
        %v472 = vpop.permute.xlu0 %471
        %v473 = vsel %vm306, %v472, %v461
        %474 = vrot.lane.b32.xlu0 %v462, 16
        %v475 = vpop.permute.xlu0 %474
        %v476 = vsel %vm306, %v475, %v462
        %477 = vrot.lane.b32.xlu0 %v473, 16
        %v478 = vpop.permute.xlu0 %477
        %479 = vrot.lane.b32.xlu0 %v476, 16
        %v480 = vpop.permute.xlu0 %479
        %v481 = vsel %vm306, %v478, %v461
        %v482 = vsel %vm306, %v480, %v462
        %483 = vrot.lane.b32.xlu0 %v466, 16
        %v484 = vpop.permute.xlu0 %483
        %v485 = vsel %vm306, %v484, %v466
        %486 = vrot.lane.b32.xlu0 %v465, 16
        %v487 = vpop.permute.xlu0 %486
        %v488 = vsel %vm306, %v487, %v465
        %489 = vrot.lane.b32.xlu0 %v485, 16
        %v490 = vpop.permute.xlu0 %489
        %491 = vrot.lane.b32.xlu0 %v488, 16
        %v492 = vpop.permute.xlu0 %491
        %v493 = vsel %vm306, %v490, %v466
        %v494 = vsel %vm306, %v492, %v465
        %495 = vrot.lane.b32.xlu0 %v469, 16
        %v496 = vpop.permute.xlu0 %495
        %v497 = vsel %vm306, %v496, %v469
        %498 = vrot.lane.b32.xlu0 %v470, 16
        %v499 = vpop.permute.xlu0 %498
        %v500 = vsel %vm306, %v499, %v470
        %501 = vrot.lane.b32.xlu0 %v497, 16
        %v502 = vpop.permute.xlu0 %501
        %503 = vrot.lane.b32.xlu0 %v500, 16
        %v504 = vpop.permute.xlu0 %503
        %v505 = vsel %vm306, %v502, %v469
        %v506 = vsel %vm306, %v504, %v470
        %509 = vrot.lane.b32.xlu0 %v493, 114
        %v510 = vpop.permute.xlu0 %509
        %511 = vrot.lane.b32.xlu0 %v494, 114
        %v512 = vpop.permute.xlu0 %511
        %v515 = vsub.f32 %v493, %v510
        %v516 = vsub.f32 %v494, %v512
        %519 = vrot.lane.b32.xlu0 %v481, 114
        %v520 = vpop.permute.xlu0 %519
        %521 = vrot.lane.b32.xlu0 %v482, 114
        %v522 = vpop.permute.xlu0 %521
        %v525 = vsub.f32 %v481, %v520
        %v526 = vsub.f32 %v482, %v522
        %v527 = vmul.f32 %v525, 2.0
        %v528 = vmul.f32 %v526, 2.0
        %v529 = vadd.f32 %v515, %v527
        %v530 = vadd.f32 %v516, %v528
        %533 = vrot.lane.b32.xlu0 %v505, 114
        %v534 = vpop.permute.xlu0 %533
        %535 = vrot.lane.b32.xlu0 %v506, 114
        %v536 = vpop.permute.xlu0 %535
        %v539 = vsub.f32 %v505, %v534
        %v540 = vsub.f32 %v506, %v536
        %v541 = vadd.f32 %v529, %v539
        %v542 = vadd.f32 %v530, %v540
        %v543 = vsub.f32 %v505, %v493
        %v544 = vsub.f32 %v506, %v494
        %v545 = vsub.f32 %v469, %v466
        %v546 = vsub.f32 %v470, %v465
        %v547 = vmul.f32 %v545, 2.0
        %v548 = vmul.f32 %v546, 2.0
        %551 = vrot.lane.b32.xlu0 %v547, 15
        %v552 = vpop.permute.xlu0 %551
        %553 = vrot.lane.b32.xlu0 %v548, 15
        %v554 = vpop.permute.xlu0 %553
        %v557 = vadd.f32 %v543, %v552
        %v558 = vadd.f32 %v544, %v554
        %561 = vrot.lane.b32.xlu0 %v543, 14
        %v562 = vpop.permute.xlu0 %561
        %563 = vrot.lane.b32.xlu0 %v544, 14
        %v564 = vpop.permute.xlu0 %563
        %v567 = vadd.f32 %v557, %v562
        %v568 = vadd.f32 %v558, %v564
        %v569 = vand.u32 2147483647, %v541
        %v570 = vand.u32 2147483647, %v542
        %v571 = vand.u32 2147483647, %v567
        %v572 = vand.u32 2147483647, %v568
        %575 = vrot.lane.b32.xlu0 %v571, 114
        %v576 = vpop.permute.xlu0 %575
        %577 = vrot.lane.b32.xlu0 %v572, 114
        %v578 = vpop.permute.xlu0 %577
        %v581 = vadd.f32 %v569, %v576
        %v582 = vadd.f32 %v570, %v578
        %vm583 = vcmp.gt.f32.partialorder %v581, 0.0
        %vm584 = vcmp.gt.f32.partialorder %v582, 0.0
        %v585 = vsel %vm583, 1, 0
        %v586 = vsel %vm584, 1, 0
        %587 = vrot.lane.b32.xlu0 %v585, 127
        %v588 = vpop.permute.xlu0 %587
        %589 = vrot.lane.b32.xlu0 %v586, 127
        %v590 = vpop.permute.xlu0 %589
        %vm591 = vcmp.ne.s32.totalorder %v588, 0
        %vm592 = vcmp.ne.s32.totalorder %v590, 0
        %vm593 = vmand %vm284, %vm591
        %vm594 = vmand %vm285, %vm592
        %v595 = vsel %vm593, 1, 0
        %v596 = vsel %vm594, 1, 0
        %v597 = vcvt.s32.f32 %v595
        %v598 = vcvt.s32.f32 %v596
        %v599 = vpack.c.bf16 %v598, %v597
        %s600 = scalar_lea.vmem %s233, 48 [#allocation7]
        %v601 = vld [vmem:[%s600] sm:$0xff]
        %v602 = vld [vmem:[%s600 + $0x8] sm:$0xff]
        %s603 = scalar_lea.vmem %s233, 32 [#allocation7]
        %v604 = vld [vmem:[%s603] sm:$0xff]
        %v605 = vld [vmem:[%s603 + $0x8] sm:$0xff]
        %vm606 = vcmp.gt.f32.partialorder %v601, %v604
        %vm607 = vcmp.gt.f32.partialorder %v602, %v605
        %v608 = vsel %vm606, 1, 0
        %v609 = vsel %vm607, 1, 0
        %v610 = vcvt.s32.f32 %v608
        %v611 = vcvt.s32.f32 %v609
        %v612 = vpack.c.bf16 %v611, %v610
        %s613 = scalar_lea.vmem [#allocation2], 8
        %v614 = vld [vmem:[%s613] sm:$0xff]
        %v615 = vadd.bf16 %v614, %v612
        %616 = vst.msk [vmem:[%s613] sm:$0xff] %vm450, %v615
        %s617 = scalar_lea.vmem [#allocation3], 8
        %v618 = vld [vmem:[%s617] sm:$0xff]
        %v619 = vadd.bf16 %v618, %v599
        %620 = vst.msk [vmem:[%s617] sm:$0xff] %vm450, %v619
        %s621 = scalar_lea.vmem [#allocation4], 16
        %v622 = vld [vmem:[%s621] sm:$0xff]
        %v623 = vld [vmem:[%s621 + $0x8] sm:$0xff]
        %vm624 = vcmp.eq.s32.totalorder %v622, %v289
        %vm625 = vcmp.eq.s32.totalorder %v623, %v289
        %v626 = vsel %vm624, 1, 0
        %v627 = vsel %vm625, 1, 0
        %v628 = vcvt.s32.f32 %v626
        %v629 = vcvt.s32.f32 %v627
        %v630 = vrot.slane %v628, 7
        %v631 = vrot.slane %v629, 7
        %v632 = vsel %vm298, %v630, %v631
        %v633 = vsel %vm298, %v631, %v630
        %v634 = vrot.slane %v628, 1
        %v635 = vrot.slane %v629, 1
        %v636 = vsel %vm303, %v634, %v635
        %v637 = vsel %vm303, %v635, %v634
        %638 = vrot.lane.b32.xlu0 %v628, 16
        %v639 = vpop.permute.xlu0 %638
        %v640 = vsel %vm306, %v639, %v628
        %641 = vrot.lane.b32.xlu0 %v629, 16
        %v642 = vpop.permute.xlu0 %641
        %v643 = vsel %vm306, %v642, %v629
        %644 = vrot.lane.b32.xlu0 %v640, 16
        %v645 = vpop.permute.xlu0 %644
        %646 = vrot.lane.b32.xlu0 %v643, 16
        %v647 = vpop.permute.xlu0 %646
        %v648 = vsel %vm306, %v645, %v628
        %v649 = vsel %vm306, %v647, %v629
        %650 = vrot.lane.b32.xlu0 %v633, 16
        %v651 = vpop.permute.xlu0 %650
        %v652 = vsel %vm306, %v651, %v633
        %653 = vrot.lane.b32.xlu0 %v632, 16
        %v654 = vpop.permute.xlu0 %653
        %v655 = vsel %vm306, %v654, %v632
        %656 = vrot.lane.b32.xlu0 %v652, 16
        %v657 = vpop.permute.xlu0 %656
        %658 = vrot.lane.b32.xlu0 %v655, 16
        %v659 = vpop.permute.xlu0 %658
        %v660 = vsel %vm306, %v657, %v633
        %v661 = vsel %vm306, %v659, %v632
        %662 = vrot.lane.b32.xlu0 %v636, 16
        %v663 = vpop.permute.xlu0 %662
        %v664 = vsel %vm306, %v663, %v636
        %665 = vrot.lane.b32.xlu0 %v637, 16
        %v666 = vpop.permute.xlu0 %665
        %v667 = vsel %vm306, %v666, %v637
        %668 = vrot.lane.b32.xlu0 %v664, 16
        %v669 = vpop.permute.xlu0 %668
        %670 = vrot.lane.b32.xlu0 %v667, 16
        %v671 = vpop.permute.xlu0 %670
        %v672 = vsel %vm306, %v669, %v636
        %v673 = vsel %vm306, %v671, %v637
        %676 = vrot.lane.b32.xlu0 %v660, 114
        %v677 = vpop.permute.xlu0 %676
        %678 = vrot.lane.b32.xlu0 %v661, 114
        %v679 = vpop.permute.xlu0 %678
        %v682 = vsub.f32 %v660, %v677
        %v683 = vsub.f32 %v661, %v679
        %686 = vrot.lane.b32.xlu0 %v648, 114
        %v687 = vpop.permute.xlu0 %686
        %688 = vrot.lane.b32.xlu0 %v649, 114
        %v689 = vpop.permute.xlu0 %688
        %v692 = vsub.f32 %v648, %v687
        %v693 = vsub.f32 %v649, %v689
        %v694 = vmul.f32 %v692, 2.0
        %v695 = vmul.f32 %v693, 2.0
        %v696 = vadd.f32 %v682, %v694
        %v697 = vadd.f32 %v683, %v695
        %700 = vrot.lane.b32.xlu0 %v672, 114
        %v701 = vpop.permute.xlu0 %700
        %702 = vrot.lane.b32.xlu0 %v673, 114
        %v703 = vpop.permute.xlu0 %702
        %v706 = vsub.f32 %v672, %v701
        %v707 = vsub.f32 %v673, %v703
        %v708 = vadd.f32 %v696, %v706
        %v709 = vadd.f32 %v697, %v707
        %v710 = vsub.f32 %v672, %v660
        %v711 = vsub.f32 %v673, %v661
        %v712 = vsub.f32 %v636, %v633
        %v713 = vsub.f32 %v637, %v632
        %v714 = vmul.f32 %v712, 2.0
        %v715 = vmul.f32 %v713, 2.0
        %718 = vrot.lane.b32.xlu0 %v714, 15
        %v719 = vpop.permute.xlu0 %718
        %720 = vrot.lane.b32.xlu0 %v715, 15
        %v721 = vpop.permute.xlu0 %720
        %v724 = vadd.f32 %v710, %v719
        %v725 = vadd.f32 %v711, %v721
        %728 = vrot.lane.b32.xlu0 %v710, 14
        %v729 = vpop.permute.xlu0 %728
        %730 = vrot.lane.b32.xlu0 %v711, 14
        %v731 = vpop.permute.xlu0 %730
        %v734 = vadd.f32 %v724, %v729
        %v735 = vadd.f32 %v725, %v731
        %v736 = vand.u32 2147483647, %v708
        %v737 = vand.u32 2147483647, %v709
        %v738 = vand.u32 2147483647, %v734
        %v739 = vand.u32 2147483647, %v735
        %742 = vrot.lane.b32.xlu0 %v738, 114
        %v743 = vpop.permute.xlu0 %742
        %744 = vrot.lane.b32.xlu0 %v739, 114
        %v745 = vpop.permute.xlu0 %744
        %v748 = vadd.f32 %v736, %v743
        %v749 = vadd.f32 %v737, %v745
        %vm750 = vcmp.gt.f32.partialorder %v748, 0.0
        %vm751 = vcmp.gt.f32.partialorder %v749, 0.0
        %v752 = vsel %vm750, 1, 0
        %v753 = vsel %vm751, 1, 0
        %754 = vrot.lane.b32.xlu0 %v752, 127
        %v755 = vpop.permute.xlu0 %754
        %756 = vrot.lane.b32.xlu0 %v753, 127
        %v757 = vpop.permute.xlu0 %756
        %vm758 = vcmp.ne.s32.totalorder %v755, 0
        %vm759 = vcmp.ne.s32.totalorder %v757, 0
        %vm760 = vmand %vm284, %vm758
        %vm761 = vmand %vm285, %vm759
        %v762 = vsel %vm760, 1, 0
        %v763 = vsel %vm761, 1, 0
        %v764 = vcvt.s32.f32 %v762
        %v765 = vcvt.s32.f32 %v763
        %v766 = vpack.c.bf16 %v765, %v764
        %s767 = scalar_lea.vmem %s233, 80 [#allocation7]
        %v768 = vld [vmem:[%s767] sm:$0xff]
        %v769 = vld [vmem:[%s767 + $0x8] sm:$0xff]
        %s770 = scalar_lea.vmem %s233, 64 [#allocation7]
        %v771 = vld [vmem:[%s770] sm:$0xff]
        %v772 = vld [vmem:[%s770 + $0x8] sm:$0xff]
        %vm773 = vcmp.gt.f32.partialorder %v768, %v771
        %vm774 = vcmp.gt.f32.partialorder %v769, %v772
        %v775 = vsel %vm773, 1, 0
        %v776 = vsel %vm774, 1, 0
        %v777 = vcvt.s32.f32 %v775
        %v778 = vcvt.s32.f32 %v776
        %v779 = vpack.c.bf16 %v778, %v777
        %v780 = vld [vmem:[#allocation2] sm:$0xff]
        %v781 = vadd.bf16 %v780, %v779
        %782 = vst.msk [vmem:[#allocation2] sm:$0xff] %vm450, %v781
        %v783 = vld [vmem:[#allocation3] sm:$0xff]
        %v784 = vadd.bf16 %v783, %v766
        %785 = vst.msk [vmem:[#allocation3] sm:$0xff] %vm450, %v784
        %vm786 = vcmp.eq.s32.totalorder %v622, %v456
        %vm787 = vcmp.eq.s32.totalorder %v623, %v456
        %v788 = vsel %vm786, 1, 0
        %v789 = vsel %vm787, 1, 0
        %v790 = vcvt.s32.f32 %v788
        %v791 = vcvt.s32.f32 %v789
        %v792 = vrot.slane %v790, 7
        %v793 = vrot.slane %v791, 7
        %v794 = vsel %vm298, %v792, %v793
        %v795 = vsel %vm298, %v793, %v792
        %v796 = vrot.slane %v790, 1
        %v797 = vrot.slane %v791, 1
        %v798 = vsel %vm303, %v796, %v797
        %v799 = vsel %vm303, %v797, %v796
        %800 = vrot.lane.b32.xlu0 %v790, 16
        %v801 = vpop.permute.xlu0 %800
        %v802 = vsel %vm306, %v801, %v790
        %803 = vrot.lane.b32.xlu0 %v791, 16
        %v804 = vpop.permute.xlu0 %803
        %v805 = vsel %vm306, %v804, %v791
        %806 = vrot.lane.b32.xlu0 %v802, 16
        %v807 = vpop.permute.xlu0 %806
        %808 = vrot.lane.b32.xlu0 %v805, 16
        %v809 = vpop.permute.xlu0 %808
        %v810 = vsel %vm306, %v807, %v790
        %v811 = vsel %vm306, %v809, %v791
        %812 = vrot.lane.b32.xlu0 %v795, 16
        %v813 = vpop.permute.xlu0 %812
        %v814 = vsel %vm306, %v813, %v795
        %815 = vrot.lane.b32.xlu0 %v794, 16
        %v816 = vpop.permute.xlu0 %815
        %v817 = vsel %vm306, %v816, %v794
        %818 = vrot.lane.b32.xlu0 %v814, 16
        %v819 = vpop.permute.xlu0 %818
        %820 = vrot.lane.b32.xlu0 %v817, 16
        %v821 = vpop.permute.xlu0 %820
        %v822 = vsel %vm306, %v819, %v795
        %v823 = vsel %vm306, %v821, %v794
        %824 = vrot.lane.b32.xlu0 %v798, 16
        %v825 = vpop.permute.xlu0 %824
        %v826 = vsel %vm306, %v825, %v798
        %827 = vrot.lane.b32.xlu0 %v799, 16
        %v828 = vpop.permute.xlu0 %827
        %v829 = vsel %vm306, %v828, %v799
        %830 = vrot.lane.b32.xlu0 %v826, 16
        %v831 = vpop.permute.xlu0 %830
        %832 = vrot.lane.b32.xlu0 %v829, 16
        %v833 = vpop.permute.xlu0 %832
        %v834 = vsel %vm306, %v831, %v798
        %v835 = vsel %vm306, %v833, %v799
        %838 = vrot.lane.b32.xlu0 %v822, 114
        %v839 = vpop.permute.xlu0 %838
        %840 = vrot.lane.b32.xlu0 %v823, 114
        %v841 = vpop.permute.xlu0 %840
        %v844 = vsub.f32 %v822, %v839
        %v845 = vsub.f32 %v823, %v841
        %848 = vrot.lane.b32.xlu0 %v810, 114
        %v849 = vpop.permute.xlu0 %848
        %850 = vrot.lane.b32.xlu0 %v811, 114
        %v851 = vpop.permute.xlu0 %850
        %v854 = vsub.f32 %v810, %v849
        %v855 = vsub.f32 %v811, %v851
        %v856 = vmul.f32 %v854, 2.0
        %v857 = vmul.f32 %v855, 2.0
        %v858 = vadd.f32 %v844, %v856
        %v859 = vadd.f32 %v845, %v857
        %862 = vrot.lane.b32.xlu0 %v834, 114
        %v863 = vpop.permute.xlu0 %862
        %864 = vrot.lane.b32.xlu0 %v835, 114
        %v865 = vpop.permute.xlu0 %864
        %v868 = vsub.f32 %v834, %v863
        %v869 = vsub.f32 %v835, %v865
        %v870 = vadd.f32 %v858, %v868
        %v871 = vadd.f32 %v859, %v869
        %v872 = vsub.f32 %v834, %v822
        %v873 = vsub.f32 %v835, %v823
        %v874 = vsub.f32 %v798, %v795
        %v875 = vsub.f32 %v799, %v794
        %v876 = vmul.f32 %v874, 2.0
        %v877 = vmul.f32 %v875, 2.0
        %880 = vrot.lane.b32.xlu0 %v876, 15
        %v881 = vpop.permute.xlu0 %880
        %882 = vrot.lane.b32.xlu0 %v877, 15
        %v883 = vpop.permute.xlu0 %882
        %v886 = vadd.f32 %v872, %v881
        %v887 = vadd.f32 %v873, %v883
        %890 = vrot.lane.b32.xlu0 %v872, 14
        %v891 = vpop.permute.xlu0 %890
        %892 = vrot.lane.b32.xlu0 %v873, 14
        %v893 = vpop.permute.xlu0 %892
        %v896 = vadd.f32 %v886, %v891
        %v897 = vadd.f32 %v887, %v893
        %v898 = vand.u32 2147483647, %v870
        %v899 = vand.u32 2147483647, %v871
        %v900 = vand.u32 2147483647, %v896
        %v901 = vand.u32 2147483647, %v897
        %904 = vrot.lane.b32.xlu0 %v900, 114
        %v905 = vpop.permute.xlu0 %904
        %906 = vrot.lane.b32.xlu0 %v901, 114
        %v907 = vpop.permute.xlu0 %906
        %v910 = vadd.f32 %v898, %v905
        %v911 = vadd.f32 %v899, %v907
        %vm912 = vcmp.gt.f32.partialorder %v910, 0.0
        %vm913 = vcmp.gt.f32.partialorder %v911, 0.0
        %v914 = vsel %vm912, 1, 0
        %v915 = vsel %vm913, 1, 0
        %916 = vrot.lane.b32.xlu0 %v914, 127
        %v917 = vpop.permute.xlu0 %916
        %918 = vrot.lane.b32.xlu0 %v915, 127
        %v919 = vpop.permute.xlu0 %918
        %vm920 = vcmp.ne.s32.totalorder %v917, 0
        %vm921 = vcmp.ne.s32.totalorder %v919, 0
        %vm922 = vmand %vm284, %vm920
        %vm923 = vmand %vm285, %vm921
        %v924 = vsel %vm922, 1, 0
        %v925 = vsel %vm923, 1, 0
        %v926 = vcvt.s32.f32 %v924
        %v927 = vcvt.s32.f32 %v925
        %v928 = vpack.c.bf16 %v927, %v926
        %s929 = scalar_lea.vmem %s233, 112 [#allocation7]
        %v930 = vld [vmem:[%s929] sm:$0xff]
        %v931 = vld [vmem:[%s929 + $0x8] sm:$0xff]
        %s932 = scalar_lea.vmem %s233, 96 [#allocation7]
        %v933 = vld [vmem:[%s932] sm:$0xff]
        %v934 = vld [vmem:[%s932 + $0x8] sm:$0xff]
        %vm935 = vcmp.gt.f32.partialorder %v930, %v933
        %vm936 = vcmp.gt.f32.partialorder %v931, %v934
        %v937 = vsel %vm935, 1, 0
        %v938 = vsel %vm936, 1, 0
        %v939 = vcvt.s32.f32 %v937
        %v940 = vcvt.s32.f32 %v938
        %v941 = vpack.c.bf16 %v940, %v939
        %v942 = vld [vmem:[%s613] sm:$0xff]
        %v943 = vadd.bf16 %v942, %v941
        %944 = vst.msk [vmem:[%s613] sm:$0xff] %vm450, %v943
        %v945 = vld [vmem:[%s617] sm:$0xff]
        %v946 = vadd.bf16 %v945, %v928
        %947 = vst.msk [vmem:[%s617] sm:$0xff] %vm450, %v946
        // Predicated region
        $region45: #{gradient_loss.1} parent=31 // pred_check
          %p948 = pneg %p260
        $region46: #{gradient_loss.1} parent=31 // pred_check_branch
          %950 = sbr.rel (%p948) target = $region48
        $region47: #{gradient_loss.1} parent=31 // pred_region
          %v951 = vld [vmem:[%s2] sm:$0xf]
          %v952 = vld [vmem:[%s2 + $0x4] sm:$0xf]
          %v953 = vunpack.c.l.bf16 %v951
          %v954 = vunpack.c.l.bf16 %v952
          %v955 = vsel %vm450, %v953, 0.0
          %956 = vadd.xlane.f32.xlu0 %v955
          %v957 = vpop.xlane.xlu0 %956
          %v958 = vsel %vm450, %v954, 0.0
          %959 = vadd.xlane.f32.xlu0 %v958
          %v960 = vpop.xlane.xlu0 %959
          %v961 = vld [vmem:[#allocation2] sm:$0xff]
          %v962 = vld [vmem:[#allocation3] sm:$0xff]
          %v965 = vunpack.c.l.b16 %v951
          %v966 = vunpack.c.l.b16 %v952
          %v967 = vpack.c.b16 %v966, %v965
          %v969 = vsel %vm450, %v967, 0
          %971 = vmatprep.subr.bf16.mxu0 0
          %972 = vmatpush1.bf16.msra.mxu0 %v961
          %973 = vmatprep.subr.bf16.mxu0 0
          %974 = vmatpush1.bf16.msra.mxu0 0
          %975 = vmatprep.subr.bf16.mxu0 0
          %976 = vmatpush1.bf16.msra.mxu0 0
          %977 = vmatprep.subr.bf16.mxu0 0
          %978 = vmatpush1.bf16.msra.mxu0 0
          %979 = vmatprep.subr.bf16.mxu0 0
          %980 = vmatpush1.bf16.msra.mxu0 0
          %981 = vmatprep.subr.bf16.mxu0 0
          %982 = vmatpush1.bf16.msra.mxu0 0
          %983 = vmatprep.subr.bf16.mxu0 0
          %984 = vmatpush1.bf16.msra.mxu0 0
          %985 = vmatprep.subr.bf16.mxu0 0
          %986 = vmatpush1.bf16.msra.mxu0 0
          %987 = vmatprep.subr.bf16.mxu0 0
          %988 = vmatpush1.bf16.msra.mxu0 0
          %989 = vmatprep.subr.bf16.mxu0 0
          %990 = vmatpush1.bf16.msra.mxu0 0
          %991 = vmatprep.subr.bf16.mxu0 0
          %992 = vmatpush1.bf16.msra.mxu0 0
          %993 = vmatprep.subr.bf16.mxu0 0
          %994 = vmatpush1.bf16.msra.mxu0 0
          %995 = vmatprep.subr.bf16.mxu0 0
          %996 = vmatpush1.bf16.msra.mxu0 0
          %997 = vmatprep.subr.bf16.mxu0 0
          %998 = vmatpush1.bf16.msra.mxu0 0
          %999 = vmatprep.subr.bf16.mxu0 0
          %1000 = vmatpush1.bf16.msra.mxu0 0
          %1001 = vmatprep.subr.bf16.mxu0 0
          %1002 = vmatpush1.bf16.msra.mxu0 0
          %1003 = vmatprep.mubr.bf16.mxu0 0
          %1004 = vmatmul.mubr.bf16.gmra.mrb[0].mxu0 %v969
          %v1005 = vpop.f32.mrb[0].mxu0
          %v1006 = vadd.f32 0.0, %v1005
          %v1007 = vpop.f32.mrb[0].mxu0
          %v1008 = vpop.f32.mrb[0].mxu0
          %v1009 = vadd.f32 0.0, %v1008
          %v1010 = vpop.f32.mrb[0].mxu0
          %1011 = vdwg.mxu0
          %v1014 = vsel %vm450, %v962, 0
          %1016 = vmatprep.subr.bf16.mxu0 0
          %1017 = vmatpush1.bf16.msra.mxu0 %v967
          %1018 = vmatprep.subr.bf16.mxu0 0
          %1019 = vmatpush1.bf16.msra.mxu0 0
          %1020 = vmatprep.subr.bf16.mxu0 0
          %1021 = vmatpush1.bf16.msra.mxu0 0
          %1022 = vmatprep.subr.bf16.mxu0 0
          %1023 = vmatpush1.bf16.msra.mxu0 0
          %1024 = vmatprep.subr.bf16.mxu0 0
          %1025 = vmatpush1.bf16.msra.mxu0 0
          %1026 = vmatprep.subr.bf16.mxu0 0
          %1027 = vmatpush1.bf16.msra.mxu0 0
          %1028 = vmatprep.subr.bf16.mxu0 0
          %1029 = vmatpush1.bf16.msra.mxu0 0
          %1030 = vmatprep.subr.bf16.mxu0 0
          %1031 = vmatpush1.bf16.msra.mxu0 0
          %1032 = vmatprep.subr.bf16.mxu0 0
          %1033 = vmatpush1.bf16.msra.mxu0 0
          %1034 = vmatprep.subr.bf16.mxu0 0
          %1035 = vmatpush1.bf16.msra.mxu0 0
          %1036 = vmatprep.subr.bf16.mxu0 0
          %1037 = vmatpush1.bf16.msra.mxu0 0
          %1038 = vmatprep.subr.bf16.mxu0 0
          %1039 = vmatpush1.bf16.msra.mxu0 0
          %1040 = vmatprep.subr.bf16.mxu0 0
          %1041 = vmatpush1.bf16.msra.mxu0 0
          %1042 = vmatprep.subr.bf16.mxu0 0
          %1043 = vmatpush1.bf16.msra.mxu0 0
          %1044 = vmatprep.subr.bf16.mxu0 0
          %1045 = vmatpush1.bf16.msra.mxu0 0
          %1046 = vmatprep.subr.bf16.mxu0 0
          %1047 = vmatpush1.bf16.msra.mxu0 0
          %1048 = vmatprep.mubr.bf16.mxu0 0
          %1049 = vmatmul.mubr.bf16.gmra.mrb[0].mxu0 %v1014
          %v1050 = vpop.f32.mrb[0].mxu0
          %v1051 = vadd.f32 0.0, %v1050
          %v1052 = vpop.f32.mrb[0].mxu0
          %v1053 = vpop.f32.mrb[0].mxu0
          %v1054 = vadd.f32 0.0, %v1053
          %v1055 = vpop.f32.mrb[0].mxu0
          %1056 = vdwg.mxu0
          %v1057 = vmul.f32 %v1006, %v1051
          %v1058 = vmul.f32 %v1009, %v1054
          %v1059 = vsel %vm450, %v1057, 0.0
          %v1060 = vsel %vm450, %v1058, 0.0
          %v1061 = vadd.f32 %v1059, %v1060
          %1062 = vadd.xlane.f32.xlu0 %v1061
          %v1063 = vpop.xlane.xlu0 %1062
          %v1064 = vrot.slane %v1063, 4
          %v1065 = vadd.f32 %v1063, %v1064
          %v1066 = vrot.slane %v1065, 2
          %v1067 = vadd.f32 %v1065, %v1066
          %v1068 = vrot.slane %v1067, 1
          %v1069 = vadd.f32 %v1067, %v1068
          %s1070 = vtos %v1069
          %s1071 = scalar_lea.smem %s255, 0 [#allocation9]
          %1072 = sst [smem:[%s1071]] %s1070
          %v1073 = vunpack.c.l.bf16 %v961
          %v1074 = vunpack.c.h.bf16 %v961
          %v1075 = vsel %vm450, %v1073, 0.0
          %v1076 = vsel %vm450, %v1074, 0.0
          %v1077 = vadd.f32 %v1075, %v1076
          %1078 = vadd.xlane.f32.xlu0 %v1077
          %v1079 = vpop.xlane.xlu0 %1078
          %v1080 = vrot.slane %v1079, 4
          %v1081 = vadd.f32 %v1079, %v1080
          %v1082 = vrot.slane %v1081, 2
          %v1083 = vadd.f32 %v1081, %v1082
          %v1084 = vrot.slane %v1083, 1
          %v1085 = vadd.f32 %v1083, %v1084
          %s1086 = vtos %v1085
          %s1087 = scalar_lea.smem %s255, 128 [#allocation9]
          %1088 = sst [smem:[%s1087]] %s1086
          %v1089 = vmul.f32 %v1051, %v957
          %v1090 = vmul.f32 %v1054, %v960
          %v1091 = vsel %vm450, %v1089, 0.0
          %v1092 = vsel %vm450, %v1090, 0.0
          %v1093 = vadd.f32 %v1091, %v1092
          %1094 = vadd.xlane.f32.xlu0 %v1093
          %v1095 = vpop.xlane.xlu0 %1094
          %v1096 = vrot.slane %v1095, 4
          %v1097 = vadd.f32 %v1095, %v1096
          %v1098 = vrot.slane %v1097, 2
          %v1099 = vadd.f32 %v1097, %v1098
          %v1100 = vrot.slane %v1099, 1
          %v1101 = vadd.f32 %v1099, %v1100
          %s1102 = vtos %v1101
          %s1103 = scalar_lea.smem %s255, 256 [#allocation9]
          %1104 = sst [smem:[%s1103]] %s1102
          %v1105 = vld [vmem:[%s613] sm:$0xff]
          %v1106 = vld [vmem:[%s617] sm:$0xff]
          %1107 = vmatprep.subr.bf16.mxu0 0
          %1108 = vmatpush1.bf16.msra.mxu0 %v1105
          %1109 = vmatprep.subr.bf16.mxu0 0
          %1110 = vmatpush1.bf16.msra.mxu0 0
          %1111 = vmatprep.subr.bf16.mxu0 0
          %1112 = vmatpush1.bf16.msra.mxu0 0
          %1113 = vmatprep.subr.bf16.mxu0 0
          %1114 = vmatpush1.bf16.msra.mxu0 0
          %1115 = vmatprep.subr.bf16.mxu0 0
          %1116 = vmatpush1.bf16.msra.mxu0 0
          %1117 = vmatprep.subr.bf16.mxu0 0
          %1118 = vmatpush1.bf16.msra.mxu0 0
          %1119 = vmatprep.subr.bf16.mxu0 0
          %1120 = vmatpush1.bf16.msra.mxu0 0
          %1121 = vmatprep.subr.bf16.mxu0 0
          %1122 = vmatpush1.bf16.msra.mxu0 0
          %1123 = vmatprep.subr.bf16.mxu0 0
          %1124 = vmatpush1.bf16.msra.mxu0 0
          %1125 = vmatprep.subr.bf16.mxu0 0
          %1126 = vmatpush1.bf16.msra.mxu0 0
          %1127 = vmatprep.subr.bf16.mxu0 0
          %1128 = vmatpush1.bf16.msra.mxu0 0
          %1129 = vmatprep.subr.bf16.mxu0 0
          %1130 = vmatpush1.bf16.msra.mxu0 0
          %1131 = vmatprep.subr.bf16.mxu0 0
          %1132 = vmatpush1.bf16.msra.mxu0 0
          %1133 = vmatprep.subr.bf16.mxu0 0
          %1134 = vmatpush1.bf16.msra.mxu0 0
          %1135 = vmatprep.subr.bf16.mxu0 0
          %1136 = vmatpush1.bf16.msra.mxu0 0
          %1137 = vmatprep.subr.bf16.mxu0 0
          %1138 = vmatpush1.bf16.msra.mxu0 0
          %1139 = vmatprep.mubr.bf16.mxu0 0
          %1140 = vmatmul.mubr.bf16.gmra.mrb[0].mxu0 %v969
          %v1141 = vpop.f32.mrb[0].mxu0
          %v1142 = vadd.f32 0.0, %v1141
          %v1143 = vpop.f32.mrb[0].mxu0
          %v1144 = vpop.f32.mrb[0].mxu0
          %v1145 = vadd.f32 0.0, %v1144
          %v1146 = vpop.f32.mrb[0].mxu0
          %1147 = vdwg.mxu0
          %v1149 = vsel %vm450, %v1106, 0
          %1151 = vmatprep.subr.bf16.mxu0 0
          %1152 = vmatpush1.bf16.msra.mxu0 %v967
          %1153 = vmatprep.subr.bf16.mxu0 0
          %1154 = vmatpush1.bf16.msra.mxu0 0
          %1155 = vmatprep.subr.bf16.mxu0 0
          %1156 = vmatpush1.bf16.msra.mxu0 0
          %1157 = vmatprep.subr.bf16.mxu0 0
          %1158 = vmatpush1.bf16.msra.mxu0 0
          %1159 = vmatprep.subr.bf16.mxu0 0
          %1160 = vmatpush1.bf16.msra.mxu0 0
          %1161 = vmatprep.subr.bf16.mxu0 0
          %1162 = vmatpush1.bf16.msra.mxu0 0
          %1163 = vmatprep.subr.bf16.mxu0 0
          %1164 = vmatpush1.bf16.msra.mxu0 0
          %1165 = vmatprep.subr.bf16.mxu0 0
          %1166 = vmatpush1.bf16.msra.mxu0 0
          %1167 = vmatprep.subr.bf16.mxu0 0
          %1168 = vmatpush1.bf16.msra.mxu0 0
          %1169 = vmatprep.subr.bf16.mxu0 0
          %1170 = vmatpush1.bf16.msra.mxu0 0
          %1171 = vmatprep.subr.bf16.mxu0 0
          %1172 = vmatpush1.bf16.msra.mxu0 0
          %1173 = vmatprep.subr.bf16.mxu0 0
          %1174 = vmatpush1.bf16.msra.mxu0 0
          %1175 = vmatprep.subr.bf16.mxu0 0
          %1176 = vmatpush1.bf16.msra.mxu0 0
          %1177 = vmatprep.subr.bf16.mxu0 0
          %1178 = vmatpush1.bf16.msra.mxu0 0
          %1179 = vmatprep.subr.bf16.mxu0 0
          %1180 = vmatpush1.bf16.msra.mxu0 0
          %1181 = vmatprep.subr.bf16.mxu0 0
          %1182 = vmatpush1.bf16.msra.mxu0 0
          %1183 = vmatprep.mubr.bf16.mxu0 0
          %1184 = vmatmul.mubr.bf16.gmra.mrb[0].mxu0 %v1149
          %v1185 = vpop.f32.mrb[0].mxu0
          %v1186 = vadd.f32 0.0, %v1185
          %v1187 = vpop.f32.mrb[0].mxu0
          %v1188 = vpop.f32.mrb[0].mxu0
          %v1189 = vadd.f32 0.0, %v1188
          %v1190 = vpop.f32.mrb[0].mxu0
          %1191 = vdwg.mxu0
          %v1192 = vmul.f32 %v1142, %v1186
          %v1193 = vmul.f32 %v1145, %v1189
          %v1194 = vsel %vm450, %v1192, 0.0
          %v1195 = vsel %vm450, %v1193, 0.0
          %v1196 = vadd.f32 %v1194, %v1195
          %1197 = vadd.xlane.f32.xlu0 %v1196
          %v1198 = vpop.xlane.xlu0 %1197
          %v1199 = vrot.slane %v1198, 4
          %v1200 = vadd.f32 %v1198, %v1199
          %v1201 = vrot.slane %v1200, 2
          %v1202 = vadd.f32 %v1200, %v1201
          %v1203 = vrot.slane %v1202, 1
          %v1204 = vadd.f32 %v1202, %v1203
          %s1205 = vtos %v1204
          %s1206 = scalar_lea.smem %s255, 1 [#allocation9]
          %1207 = sst [smem:[%s1206]] %s1205
          %v1208 = vunpack.c.l.bf16 %v1105
          %v1209 = vunpack.c.h.bf16 %v1105
          %v1210 = vsel %vm450, %v1208, 0.0
          %v1211 = vsel %vm450, %v1209, 0.0
          %v1212 = vadd.f32 %v1210, %v1211
          %1213 = vadd.xlane.f32.xlu0 %v1212
          %v1214 = vpop.xlane.xlu0 %1213
          %v1215 = vrot.slane %v1214, 4
          %v1216 = vadd.f32 %v1214, %v1215
          %v1217 = vrot.slane %v1216, 2
          %v1218 = vadd.f32 %v1216, %v1217
          %v1219 = vrot.slane %v1218, 1
          %v1220 = vadd.f32 %v1218, %v1219
          %s1221 = vtos %v1220
          %s1222 = scalar_lea.smem %s255, 129 [#allocation9]
          %1223 = sst [smem:[%s1222]] %s1221
          %v1224 = vmul.f32 %v1186, %v957
          %v1225 = vmul.f32 %v1189, %v960
          %v1226 = vsel %vm450, %v1224, 0.0
          %v1227 = vsel %vm450, %v1225, 0.0
          %v1228 = vadd.f32 %v1226, %v1227
          %1229 = vadd.xlane.f32.xlu0 %v1228
          %v1230 = vpop.xlane.xlu0 %1229
          %v1231 = vrot.slane %v1230, 4
          %v1232 = vadd.f32 %v1230, %v1231
          %v1233 = vrot.slane %v1232, 2
          %v1234 = vadd.f32 %v1232, %v1233
          %v1235 = vrot.slane %v1234, 1
          %v1236 = vadd.f32 %v1234, %v1235
          %s1237 = vtos %v1236
          %s1238 = scalar_lea.smem %s255, 257 [#allocation9]
          %1239 = sst [smem:[%s1238]] %s1237
        $region48: #{gradient_loss.1} parent=31 // pred_fallthru
          _
        %s1240 = sand.u32 %s116, 1
        %s1241 = scalar_lea.sflag [#allocation6], %s1240
        %s1242 = sand.u32 %s116, 1
        %s1243 = smul.addr %s1242, 512
        %s1244 = scalar_lea.smem [#allocation9], %s1243
        // Predicated region
        $region49: #{gradient_loss.1} parent=31 // pred_check
          %p1245 = pneg %p126
        $region50: #{gradient_loss.1} parent=31 // pred_check_branch
          %1247 = sbr.rel (%p1245) target = $region52
        $region51: #{gradient_loss.1} parent=31 // pred_region
          %s1249 = ssub.s32 64, 64
          %1250 = vsyncadd %s1241, %s1249
          %s1251 = smul.addr %s25, 4
          %s1252 = scalar_lea.vmem %s3, %s1251
          %s1254 = sshll.u32 %s1252, 4
          %s1255 = int_to_ptr.vmem [resolvable:$true] %s1254
          %1257 = dma.smem_to_vmem %s1244, 64, %s1255, %s1241
        $region52: #{gradient_loss.1} parent=31 // pred_fallthru
          _
      $region32: #{gradient_loss.1} parent=5 // pred_fallthru
        _
      %p1258 = scmp.le.s32.totalorder 2, %s16
      // Predicated region
      $region53: #{gradient_loss.1} parent=5 // pred_check
        %p1259 = pneg %p1258
      $region54: #{gradient_loss.1} parent=5 // pred_check_branch
        %1261 = sbr.rel (%p1259) target = $region56
      $region55: #{gradient_loss.1} parent=5 // pred_region
        %s1262 = ssub.s32 %s16, 2
        // Predicated region
        $region57: #{gradient_loss.1} parent=55 // pred_check
          %p1263 = pneg %p132
        $region58: #{gradient_loss.1} parent=55 // pred_check_branch
          %1265 = sbr.rel (%p1263) target = $region60
        $region59: #{gradient_loss.1} parent=55 // pred_region
          %s1266 = sand.u32 %s117, 1
          %s1267 = scalar_lea.sflag [#allocation6], %s1266
          %s1268 = sand.u32 %s117, 1
          %s1269 = smul.addr %s1268, 512
          %s1270 = scalar_lea.smem [#allocation9], %s1269
          %1271 = dma.done %s1267, 64
        $region60: #{gradient_loss.1} parent=55 // pred_fallthru
          _
        %1272 = sfence
      $region56: #{gradient_loss.1} parent=5 // pred_fallthru
        _
    $region6: #{gradient_loss.1} parent=1 // loop_footer
      %s20 = sadd.s32 1, %s16
    $region7: #{gradient_loss.1} parent=1 // loop_footer_branch
      %15 = sbr.rel target = $region3
    $region8: #{gradient_loss.1} parent=1 // loop_exit
      _
    %1273 = vsyncpa [#allocation5], 1
    %s1274 = scalar_lea.sflag [#allocation5], 1
    %1275 = vsyncpa %s1274, 1
    %1276 = vsyncpa [#allocation8], 1
    %s1277 = scalar_lea.sflag [#allocation8], 1
    %1278 = vsyncpa %s1277, 1
    %1279 = vsyncpa [#allocation6], 1
    %s1280 = scalar_lea.sflag [#allocation6], 1
    %1281 = vsyncpa %s1280, 1

</llo_original>
